<compile_context>
chip_gen: v7x
topology: tpu7x:2x2x1
jax: 0.10.0
libtpu: 0.0.40
codegen_flags: <defaults>
</compile_context>

<pallas_src>
import functools

import jax
import jax.numpy as jnp
from jax.experimental import pallas as pl
from jax.experimental.pallas import tpu as pltpu


def _layernorm(x, w, b, eps=1e-5):
    # f32 row-wise LayerNorm (VPU); matmul inputs are cast to bf16 afterwards.
    mu = jnp.mean(x, axis=-1, keepdims=True)
    var = jnp.mean((x - mu) ** 2, axis=-1, keepdims=True)
    return (x - mu) * jax.lax.rsqrt(var + eps) * w + b


def transformer_layer_kernel(xq_ref, xkv_ref, ln1w_ref, ln1b_ref,
                             wq_ref, wk_ref, wv_ref, wp_ref, bp_ref,
                             ln2w_ref, ln2b_ref,
                             w1_ref, b1_ref, w2_ref, b2_ref,
                             out_ref, k_scratch, v_scratch, *, num_heads):
    i = pl.program_id(1)
    bf16 = jnp.bfloat16

    # ---- once per batch (query-tile 0): project full sequence to K/V --------
    @pl.when(i == 0)
    def _():
        x_all = xkv_ref[0]                                             # (N, C) f32
        xn_all = _layernorm(x_all, ln1w_ref[...], ln1b_ref[...]).astype(bf16)
        for h in range(num_heads):                                     # static unroll
            k_scratch[h] = jnp.dot(
                xn_all, wk_ref[h], preferred_element_type=jnp.float32).astype(bf16)
            v_scratch[h] = jnp.dot(
                xn_all, wv_ref[h], preferred_element_type=jnp.float32).astype(bf16)

    # ---- attention branch on this query tile: x + attn(norm1(x)) ------------
    x_q = xq_ref[0]                                                    # (tq, C) f32
    tq, c = x_q.shape
    xn_q = _layernorm(x_q, ln1w_ref[...], ln1b_ref[...]).astype(bf16)

    attn_acc = jnp.zeros((tq, c), jnp.float32)
    for h in range(num_heads):                                         # static unroll
        # (tq, d) — attention scale already folded into wq in the wrapper
        qh = jnp.dot(xn_q, wq_ref[h], preferred_element_type=jnp.float32)
        # scores against all keys of this batch: (tq, N)
        s = jax.lax.dot_general(
            qh.astype(bf16), k_scratch[h],
            dimension_numbers=(((1,), (1,)), ((), ())),
            preferred_element_type=jnp.float32)
        s = s - jnp.max(s, axis=-1, keepdims=True)
        p = jnp.exp(s)
        p = p * pl.reciprocal(jnp.sum(p, axis=-1, keepdims=True), approx=True)
        # (tq, d)
        oh = jnp.dot(p.astype(bf16), v_scratch[h],
                     preferred_element_type=jnp.float32)
        # fold the output projection per head and accumulate into a (tq, C) slab
        attn_acc = attn_acc + jnp.dot(oh.astype(bf16), wp_ref[h],
                                      preferred_element_type=jnp.float32)
    x1 = x_q + attn_acc + bp_ref[...]

    # ---- mlp branch: x1 + mlp(norm2(x1)) ------------------------------------
    xn2 = _layernorm(x1, ln2w_ref[...], ln2b_ref[...]).astype(bf16)
    hdn = jnp.dot(xn2, w1_ref[...], preferred_element_type=jnp.float32) + b1_ref[...]
    hdn = jnp.maximum(hdn, 0.0).astype(bf16)            # ReLU; dropout(p=0)=identity
    mlp_out = jnp.dot(hdn, w2_ref[...], preferred_element_type=jnp.float32) + b2_ref[...]

    out_ref[0] = x1 + mlp_out


def transformer_layer(x, params, num_heads, tq=None):
    B, N, C = x.shape
    assert C % num_heads == 0
    d = C // num_heads
    H = params["w1"].shape[1]
    scale = d ** (-0.5)
    bf16 = jnp.bfloat16

    if tq is None:
        tq = N if N <= 256 else 256
    assert N % tq == 0, "tq must divide N"
    nq = N // tq

    # ---- weight pre-processing (wrapper-side, one-time) ----------------------
    # split fused kv weight on the output (leading after transpose) dim, reshape
    # everything head-major, fold the attention scale into Wq, cast to bf16.
    wq = params["wq"]                      # (C, C)
    wkv = params["wkv"]                    # (C, 2C)
    wk, wv = wkv[:, :C], wkv[:, C:]
    wq_h = (wq * scale).reshape(C, num_heads, d).transpose(1, 0, 2).astype(bf16)
    wk_h = wk.reshape(C, num_heads, d).transpose(1, 0, 2).astype(bf16)
    wv_h = wv.reshape(C, num_heads, d).transpose(1, 0, 2).astype(bf16)
    wp_h = params["wp"].reshape(num_heads, d, C).astype(bf16)
    w1 = params["w1"].astype(bf16)
    w2 = params["w2"].astype(bf16)

    def rep2(shape):
        return pl.BlockSpec(shape, lambda b, i: (0, 0))

    def rep3(shape):
        return pl.BlockSpec(shape, lambda b, i: (0, 0, 0))

    in_specs = [
        pl.BlockSpec((1, tq, C), lambda b, i: (b, i, 0)),   # x: query/residual tile
        pl.BlockSpec((1, N, C), lambda b, i: (b, 0, 0)),    # x: full sequence (K/V)
        rep2((1, C)), rep2((1, C)),                         # ln1 w, b
        rep3((num_heads, C, d)),                            # Wq (scaled, head-major)
        rep3((num_heads, C, d)),                            # Wk
        rep3((num_heads, C, d)),                            # Wv
        rep3((num_heads, d, C)), rep2((1, C)),              # Wproj, bproj
        rep2((1, C)), rep2((1, C)),                         # ln2 w, b
        rep2((C, H)), rep2((1, H)),                         # fc1 W, b
        rep2((H, C)), rep2((1, C)),                         # fc2 W, b
    ]
    out_spec = pl.BlockSpec((1, tq, C), lambda b, i: (b, i, 0))

    # advisory cost for the XLA scheduler
    flops = B * (8 * N * C * C + 4 * N * N * C + 4 * N * C * H)
    transcendentals = B * N * N
    bytes_accessed = (3 * B * N * C * 4
                      + (4 * C * C + 2 * C * H) * 2
                      + (6 * C + H) * 4)

    kernel = functools.partial(transformer_layer_kernel, num_heads=num_heads)
    return pl.pallas_call(
        kernel,
        out_shape=jax.ShapeDtypeStruct((B, N, C), jnp.float32),
        grid=(B, nq),
        in_specs=in_specs,
        out_specs=out_spec,
        scratch_shapes=[
            pltpu.VMEM((num_heads, N, d), bf16),   # cached K (head-major)
            pltpu.VMEM((num_heads, N, d), bf16),   # cached V (head-major)
        ],
        compiler_params=pltpu.CompilerParams(
            dimension_semantics=("parallel", "arbitrary"),
            vmem_limit_bytes=48 * 1024 * 1024,
        ),
        cost_estimate=pl.CostEstimate(
            flops=flops,
            transcendentals=transcendentals,
            bytes_accessed=bytes_accessed,
        ),
    )(x, x, params["ln1_w"], params["ln1_b"],
      wq_h, wk_h, wv_h, wp_h, params["bp"],
      params["ln2_w"], params["ln2_b"],
      w1, params["b1"], w2, params["b2"])


def init_params(key, dim_self, num_heads, mlp_ratio=4.0):
    C = dim_self
    H = int(C * mlp_ratio)
    ks = jax.random.split(key, 8)
    s = 0.05
    return {
        # LayerNorm affine params (slightly perturbed for a non-trivial check)
        "ln1_w": jnp.ones((1, C), jnp.float32) + s * jax.random.normal(ks[0], (1, C)),
        "ln1_b": s * jax.random.normal(ks[1], (1, C)),
        "ln2_w": jnp.ones((1, C), jnp.float32) + s * jax.random.normal(ks[2], (1, C)),
        "ln2_b": s * jax.random.normal(ks[3], (1, C)),
        # attention (to_queries / to_keys_values have bias=False; project has bias)
        "wq": s * jax.random.normal(ks[4], (C, C), jnp.float32),
        "wkv": s * jax.random.normal(ks[5], (C, 2 * C), jnp.float32),
        "wp": s * jax.random.normal(ks[6], (C, C), jnp.float32),
        "bp": s * jax.random.normal(ks[7], (1, C), jnp.float32),
        # mlp
        "w1": s * jax.random.normal(jax.random.fold_in(key, 10), (C, H), jnp.float32),
        "b1": s * jax.random.normal(jax.random.fold_in(key, 11), (1, H), jnp.float32),
        "w2": s * jax.random.normal(jax.random.fold_in(key, 12), (H, C), jnp.float32),
        "b2": s * jax.random.normal(jax.random.fold_in(key, 13), (1, C), jnp.float32),
    }


def reference(x, p, num_heads):
    def ln(z, w, b):
        mu = jnp.mean(z, axis=-1, keepdims=True)
        var = jnp.mean((z - mu) ** 2, axis=-1, keepdims=True)
        return (z - mu) / jnp.sqrt(var + 1e-5) * w + b

    B, N, C = x.shape
    d = C // num_heads
    xn = ln(x, p["ln1_w"][0], p["ln1_b"][0])
    q = xn @ p["wq"]
    kv = xn @ p["wkv"]
    k, v = kv[..., :C], kv[..., C:]
    qh = q.reshape(B, N, num_heads, d)
    kh = k.reshape(B, N, num_heads, d)
    vh = v.reshape(B, N, num_heads, d)
    att = jnp.einsum("bnhd,bmhd->bnmh", qh, kh) * (d ** -0.5)
    att = jax.nn.softmax(att, axis=2)
    o = jnp.einsum("bnmh,bmhd->bnhd", att, vh).reshape(B, N, C)
    x1 = x + o @ p["wp"] + p["bp"][0]
    x2n = ln(x1, p["ln2_w"][0], p["ln2_b"][0])
    h = jnp.maximum(x2n @ p["w1"] + p["b1"][0], 0.0)
    return x1 + h @ p["w2"] + p["b2"][0]


if __name__ == "__main__":
    # dim_self=32, dim_ref=32, num_heads=4, mlp hidden=128; two query tiles of 8
    B, N, C, num_heads = 2, 16, 32, 4

    key = jax.random.PRNGKey(0)
    kx, kp = jax.random.split(key)
    x = jax.random.normal(kx, (B, N, C), jnp.float32)
    params = init_params(kp, C, num_heads)

    out = transformer_layer(x, params, num_heads, tq=8)
    out = jax.block_until_ready(out)

    ref = reference(x, params, num_heads)
    assert out.shape == (B, N, C)
    # bf16 matmul inputs + approx reciprocal vs f32 reference -> relaxed tolerance
    assert bool(jnp.allclose(out, ref, rtol=2e-2, atol=2e-2)), "mismatch vs reference"

    print("KERNEL_OK")
</pallas_src>

<mosaic_0001>
module attributes {stable_mosaic.version = 11 : i64} {
  func.func @transformer_layer_kernel(%arg0: i32, %arg1: i32, %arg2: memref<1x8x32xf32, #tpu.memory_space<vmem>>, %arg3: memref<1x16x32xf32, #tpu.memory_space<vmem>>, %arg4: memref<1x32xf32, #tpu.memory_space<vmem>>, %arg5: memref<1x32xf32, #tpu.memory_space<vmem>>, %arg6: memref<4x32x8xbf16, #tpu.memory_space<vmem>>, %arg7: memref<4x32x8xbf16, #tpu.memory_space<vmem>>, %arg8: memref<4x32x8xbf16, #tpu.memory_space<vmem>>, %arg9: memref<4x8x32xbf16, #tpu.memory_space<vmem>>, %arg10: memref<1x32xf32, #tpu.memory_space<vmem>>, %arg11: memref<1x32xf32, #tpu.memory_space<vmem>>, %arg12: memref<1x32xf32, #tpu.memory_space<vmem>>, %arg13: memref<32x128xbf16, #tpu.memory_space<vmem>>, %arg14: memref<1x128xf32, #tpu.memory_space<vmem>>, %arg15: memref<128x32xbf16, #tpu.memory_space<vmem>>, %arg16: memref<1x32xf32, #tpu.memory_space<vmem>>, %arg17: memref<1x8x32xf32, #tpu.memory_space<vmem>>, %arg18: memref<4x16x8xbf16, #tpu.memory_space<vmem>>, %arg19: memref<4x16x8xbf16, #tpu.memory_space<vmem>>) attributes {dimension_semantics = [#tpu.dimension_semantics<parallel>, #tpu.dimension_semantics<arbitrary>], iteration_bounds = array<i64: 2, 2>, scalar_prefetch = 0 : i64, scratch_operands = 2 : i64, tpu.core_type = #tpu.core_type<tc>, window_params = [{transform_indices = @transform_0, window_bounds = array<i64: 1, 8, 32>}, {transform_indices = @transform_1, window_bounds = array<i64: 1, 16, 32>}, {pipeline_mode = #tpu.pipeline_mode<synchronous>, transform_indices = @transform_2, window_bounds = array<i64: 1, 32>}, {pipeline_mode = #tpu.pipeline_mode<synchronous>, transform_indices = @transform_3, window_bounds = array<i64: 1, 32>}, {pipeline_mode = #tpu.pipeline_mode<synchronous>, transform_indices = @transform_4, window_bounds = array<i64: 4, 32, 8>}, {pipeline_mode = #tpu.pipeline_mode<synchronous>, transform_indices = @transform_5, window_bounds = array<i64: 4, 32, 8>}, {pipeline_mode = #tpu.pipeline_mode<synchronous>, transform_indices = @transform_6, window_bounds = array<i64: 4, 32, 8>}, {pipeline_mode = #tpu.pipeline_mode<synchronous>, transform_indices = @transform_7, window_bounds = array<i64: 4, 8, 32>}, {pipeline_mode = #tpu.pipeline_mode<synchronous>, transform_indices = @transform_8, window_bounds = array<i64: 1, 32>}, {pipeline_mode = #tpu.pipeline_mode<synchronous>, transform_indices = @transform_9, window_bounds = array<i64: 1, 32>}, {pipeline_mode = #tpu.pipeline_mode<synchronous>, transform_indices = @transform_10, window_bounds = array<i64: 1, 32>}, {pipeline_mode = #tpu.pipeline_mode<synchronous>, transform_indices = @transform_11, window_bounds = array<i64: 32, 128>}, {pipeline_mode = #tpu.pipeline_mode<synchronous>, transform_indices = @transform_12, window_bounds = array<i64: 1, 128>}, {pipeline_mode = #tpu.pipeline_mode<synchronous>, transform_indices = @transform_13, window_bounds = array<i64: 128, 32>}, {pipeline_mode = #tpu.pipeline_mode<synchronous>, transform_indices = @transform_14, window_bounds = array<i64: 1, 32>}, {transform_indices = @transform_15, window_bounds = array<i64: 1, 8, 32>}]} {
    %c0_i32 = arith.constant 0 : i32
    %0 = arith.cmpi eq, %arg1, %c0_i32 : i32
    %1 = arith.extui %0 : i1 to i32
    %c0_i32_0 = arith.constant 0 : i32
    %2 = arith.cmpi ne, %1, %c0_i32_0 : i32
    scf.if %2 {
      %c0_106 = arith.constant 0 : index
      %c0_107 = arith.constant 0 : index
      %c0_108 = arith.constant 0 : index
      %181 = vector.load %arg3[%c0_106, %c0_107, %c0_108] : memref<1x16x32xf32, #tpu.memory_space<vmem>>, vector<1x16x32xf32>
      %182 = vector.shape_cast %181 : vector<1x16x32xf32> to vector<16x32xf32>
      %c0_109 = arith.constant 0 : index
      %c0_110 = arith.constant 0 : index
      %183 = vector.load %arg4[%c0_109, %c0_110] : memref<1x32xf32, #tpu.memory_space<vmem>>, vector<1x32xf32>
      %c0_111 = arith.constant 0 : index
      %c0_112 = arith.constant 0 : index
      %184 = vector.load %arg5[%c0_111, %c0_112] : memref<1x32xf32, #tpu.memory_space<vmem>>, vector<1x32xf32>
      %cst_113 = arith.constant dense<0.000000e+00> : vector<16xf32>
      %185 = vector.multi_reduction <add>, %182, %cst_113 [1] : vector<16x32xf32> to vector<16xf32>
      %186 = vector.shape_cast %185 : vector<16xf32> to vector<16x1xf32>
      %cst_114 = arith.constant 3.200000e+01 : f32
      %187 = vector.broadcast %cst_114 : f32 to vector<16x1xf32>
      %188 = arith.divf %186, %187 : vector<16x1xf32>
      %189 = vector.broadcast %188 : vector<16x1xf32> to vector<16x32xf32>
      %190 = arith.subf %182, %189 : vector<16x32xf32>
      %191 = arith.mulf %190, %190 : vector<16x32xf32>
      %cst_115 = arith.constant dense<0.000000e+00> : vector<16xf32>
      %192 = vector.multi_reduction <add>, %191, %cst_115 [1] : vector<16x32xf32> to vector<16xf32>
      %193 = vector.shape_cast %192 : vector<16xf32> to vector<16x1xf32>
      %cst_116 = arith.constant 3.200000e+01 : f32
      %194 = vector.broadcast %cst_116 : f32 to vector<16x1xf32>
      %195 = arith.divf %193, %194 : vector<16x1xf32>
      %196 = vector.broadcast %188 : vector<16x1xf32> to vector<16x32xf32>
      %197 = arith.subf %182, %196 : vector<16x32xf32>
      %cst_117 = arith.constant 9.99999974E-6 : f32
      %198 = vector.broadcast %cst_117 : f32 to vector<16x1xf32>
      %199 = arith.addf %195, %198 : vector<16x1xf32>
      %200 = math.rsqrt %199 : vector<16x1xf32>
      %201 = vector.broadcast %200 : vector<16x1xf32> to vector<16x32xf32>
      %202 = arith.mulf %197, %201 : vector<16x32xf32>
      %203 = vector.broadcast %183 : vector<1x32xf32> to vector<16x32xf32>
      %204 = arith.mulf %202, %203 : vector<16x32xf32>
      %205 = vector.broadcast %184 : vector<1x32xf32> to vector<16x32xf32>
      %206 = arith.addf %204, %205 : vector<16x32xf32>
      %207 = arith.truncf %206 : vector<16x32xf32> to vector<16x32xbf16>
      %c0_118 = arith.constant 0 : index
      %c0_119 = arith.constant 0 : index
      %c0_120 = arith.constant 0 : index
      %208 = vector.load %arg7[%c0_118, %c0_119, %c0_120] : memref<4x32x8xbf16, #tpu.memory_space<vmem>>, vector<1x32x8xbf16>
      %209 = vector.shape_cast %208 : vector<1x32x8xbf16> to vector<32x8xbf16>
      %cst_121 = arith.constant dense<0.000000e+00> : vector<16x8xf32>
      %210 = tpu.matmul %207, %209, %cst_121 {dimension_numbers = #tpu.dot_dimension_numbers<[1], [0], [0], [1], [0, 0, 1, 1], [], []>} : vector<16x32xbf16>, vector<32x8xbf16>, vector<16x8xf32> -> vector<16x8xf32>
      %211 = arith.truncf %210 : vector<16x8xf32> to vector<16x8xbf16>
      %c0_122 = arith.constant 0 : index
      %c0_123 = arith.constant 0 : index
      %c0_124 = arith.constant 0 : index
      %212 = vector.load %arg18[%c0_122, %c0_123, %c0_124] : memref<4x16x8xbf16, #tpu.memory_space<vmem>>, vector<1x16x8xbf16>
      %213 = vector.shape_cast %212 : vector<1x16x8xbf16> to vector<16x8xbf16>
      %214 = vector.shape_cast %211 : vector<16x8xbf16> to vector<1x16x8xbf16>
      tpu.vector_store %arg18[%c0_122, %c0_123, %c0_124], %214 {strides = array<i32>} : memref<4x16x8xbf16, #tpu.memory_space<vmem>>, vector<1x16x8xbf16>,
      %c0_125 = arith.constant 0 : index
      %c0_126 = arith.constant 0 : index
      %c0_127 = arith.constant 0 : index
      %215 = vector.load %arg8[%c0_125, %c0_126, %c0_127] : memref<4x32x8xbf16, #tpu.memory_space<vmem>>, vector<1x32x8xbf16>
      %216 = vector.shape_cast %215 : vector<1x32x8xbf16> to vector<32x8xbf16>
      %cst_128 = arith.constant dense<0.000000e+00> : vector<16x8xf32>
      %217 = tpu.matmul %207, %216, %cst_128 {dimension_numbers = #tpu.dot_dimension_numbers<[1], [0], [0], [1], [0, 0, 1, 1], [], []>} : vector<16x32xbf16>, vector<32x8xbf16>, vector<16x8xf32> -> vector<16x8xf32>
      %218 = arith.truncf %217 : vector<16x8xf32> to vector<16x8xbf16>
      %c0_129 = arith.constant 0 : index
      %c0_130 = arith.constant 0 : index
      %c0_131 = arith.constant 0 : index
      %219 = vector.load %arg19[%c0_129, %c0_130, %c0_131] : memref<4x16x8xbf16, #tpu.memory_space<vmem>>, vector<1x16x8xbf16>
      %220 = vector.shape_cast %219 : vector<1x16x8xbf16> to vector<16x8xbf16>
      %221 = vector.shape_cast %218 : vector<16x8xbf16> to vector<1x16x8xbf16>
      tpu.vector_store %arg19[%c0_129, %c0_130, %c0_131], %221 {strides = array<i32>} : memref<4x16x8xbf16, #tpu.memory_space<vmem>>, vector<1x16x8xbf16>,
      %c1_132 = arith.constant 1 : index
      %c0_133 = arith.constant 0 : index
      %c0_134 = arith.constant 0 : index
      %222 = vector.load %arg7[%c1_132, %c0_133, %c0_134] : memref<4x32x8xbf16, #tpu.memory_space<vmem>>, vector<1x32x8xbf16>
      %223 = vector.shape_cast %222 : vector<1x32x8xbf16> to vector<32x8xbf16>
      %cst_135 = arith.constant dense<0.000000e+00> : vector<16x8xf32>
      %224 = tpu.matmul %207, %223, %cst_135 {dimension_numbers = #tpu.dot_dimension_numbers<[1], [0], [0], [1], [0, 0, 1, 1], [], []>} : vector<16x32xbf16>, vector<32x8xbf16>, vector<16x8xf32> -> vector<16x8xf32>
      %225 = arith.truncf %224 : vector<16x8xf32> to vector<16x8xbf16>
      %c1_136 = arith.constant 1 : index
      %c0_137 = arith.constant 0 : index
      %c0_138 = arith.constant 0 : index
      %226 = vector.load %arg18[%c1_136, %c0_137, %c0_138] : memref<4x16x8xbf16, #tpu.memory_space<vmem>>, vector<1x16x8xbf16>
      %227 = vector.shape_cast %226 : vector<1x16x8xbf16> to vector<16x8xbf16>
      %228 = vector.shape_cast %225 : vector<16x8xbf16> to vector<1x16x8xbf16>
      tpu.vector_store %arg18[%c1_136, %c0_137, %c0_138], %228 {strides = array<i32>} : memref<4x16x8xbf16, #tpu.memory_space<vmem>>, vector<1x16x8xbf16>,
      %c1_139 = arith.constant 1 : index
      %c0_140 = arith.constant 0 : index
      %c0_141 = arith.constant 0 : index
      %229 = vector.load %arg8[%c1_139, %c0_140, %c0_141] : memref<4x32x8xbf16, #tpu.memory_space<vmem>>, vector<1x32x8xbf16>
      %230 = vector.shape_cast %229 : vector<1x32x8xbf16> to vector<32x8xbf16>
      %cst_142 = arith.constant dense<0.000000e+00> : vector<16x8xf32>
      %231 = tpu.matmul %207, %230, %cst_142 {dimension_numbers = #tpu.dot_dimension_numbers<[1], [0], [0], [1], [0, 0, 1, 1], [], []>} : vector<16x32xbf16>, vector<32x8xbf16>, vector<16x8xf32> -> vector<16x8xf32>
      %232 = arith.truncf %231 : vector<16x8xf32> to vector<16x8xbf16>
      %c1_143 = arith.constant 1 : index
      %c0_144 = arith.constant 0 : index
      %c0_145 = arith.constant 0 : index
      %233 = vector.load %arg19[%c1_143, %c0_144, %c0_145] : memref<4x16x8xbf16, #tpu.memory_space<vmem>>, vector<1x16x8xbf16>
      %234 = vector.shape_cast %233 : vector<1x16x8xbf16> to vector<16x8xbf16>
      %235 = vector.shape_cast %232 : vector<16x8xbf16> to vector<1x16x8xbf16>
      tpu.vector_store %arg19[%c1_143, %c0_144, %c0_145], %235 {strides = array<i32>} : memref<4x16x8xbf16, #tpu.memory_space<vmem>>, vector<1x16x8xbf16>,
      %c2_146 = arith.constant 2 : index
      %c0_147 = arith.constant 0 : index
      %c0_148 = arith.constant 0 : index
      %236 = vector.load %arg7[%c2_146, %c0_147, %c0_148] : memref<4x32x8xbf16, #tpu.memory_space<vmem>>, vector<1x32x8xbf16>
      %237 = vector.shape_cast %236 : vector<1x32x8xbf16> to vector<32x8xbf16>
      %cst_149 = arith.constant dense<0.000000e+00> : vector<16x8xf32>
      %238 = tpu.matmul %207, %237, %cst_149 {dimension_numbers = #tpu.dot_dimension_numbers<[1], [0], [0], [1], [0, 0, 1, 1], [], []>} : vector<16x32xbf16>, vector<32x8xbf16>, vector<16x8xf32> -> vector<16x8xf32>
      %239 = arith.truncf %238 : vector<16x8xf32> to vector<16x8xbf16>
      %c2_150 = arith.constant 2 : index
      %c0_151 = arith.constant 0 : index
      %c0_152 = arith.constant 0 : index
      %240 = vector.load %arg18[%c2_150, %c0_151, %c0_152] : memref<4x16x8xbf16, #tpu.memory_space<vmem>>, vector<1x16x8xbf16>
      %241 = vector.shape_cast %240 : vector<1x16x8xbf16> to vector<16x8xbf16>
      %242 = vector.shape_cast %239 : vector<16x8xbf16> to vector<1x16x8xbf16>
      tpu.vector_store %arg18[%c2_150, %c0_151, %c0_152], %242 {strides = array<i32>} : memref<4x16x8xbf16, #tpu.memory_space<vmem>>, vector<1x16x8xbf16>,
      %c2_153 = arith.constant 2 : index
      %c0_154 = arith.constant 0 : index
      %c0_155 = arith.constant 0 : index
      %243 = vector.load %arg8[%c2_153, %c0_154, %c0_155] : memref<4x32x8xbf16, #tpu.memory_space<vmem>>, vector<1x32x8xbf16>
      %244 = vector.shape_cast %243 : vector<1x32x8xbf16> to vector<32x8xbf16>
      %cst_156 = arith.constant dense<0.000000e+00> : vector<16x8xf32>
      %245 = tpu.matmul %207, %244, %cst_156 {dimension_numbers = #tpu.dot_dimension_numbers<[1], [0], [0], [1], [0, 0, 1, 1], [], []>} : vector<16x32xbf16>, vector<32x8xbf16>, vector<16x8xf32> -> vector<16x8xf32>
      %246 = arith.truncf %245 : vector<16x8xf32> to vector<16x8xbf16>
      %c2_157 = arith.constant 2 : index
      %c0_158 = arith.constant 0 : index
      %c0_159 = arith.constant 0 : index
      %247 = vector.load %arg19[%c2_157, %c0_158, %c0_159] : memref<4x16x8xbf16, #tpu.memory_space<vmem>>, vector<1x16x8xbf16>
      %248 = vector.shape_cast %247 : vector<1x16x8xbf16> to vector<16x8xbf16>
      %249 = vector.shape_cast %246 : vector<16x8xbf16> to vector<1x16x8xbf16>
      tpu.vector_store %arg19[%c2_157, %c0_158, %c0_159], %249 {strides = array<i32>} : memref<4x16x8xbf16, #tpu.memory_space<vmem>>, vector<1x16x8xbf16>,
      %c3_160 = arith.constant 3 : index
      %c0_161 = arith.constant 0 : index
      %c0_162 = arith.constant 0 : index
      %250 = vector.load %arg7[%c3_160, %c0_161, %c0_162] : memref<4x32x8xbf16, #tpu.memory_space<vmem>>, vector<1x32x8xbf16>
      %251 = vector.shape_cast %250 : vector<1x32x8xbf16> to vector<32x8xbf16>
      %cst_163 = arith.constant dense<0.000000e+00> : vector<16x8xf32>
      %252 = tpu.matmul %207, %251, %cst_163 {dimension_numbers = #tpu.dot_dimension_numbers<[1], [0], [0], [1], [0, 0, 1, 1], [], []>} : vector<16x32xbf16>, vector<32x8xbf16>, vector<16x8xf32> -> vector<16x8xf32>
      %253 = arith.truncf %252 : vector<16x8xf32> to vector<16x8xbf16>
      %c3_164 = arith.constant 3 : index
      %c0_165 = arith.constant 0 : index
      %c0_166 = arith.constant 0 : index
      %254 = vector.load %arg18[%c3_164, %c0_165, %c0_166] : memref<4x16x8xbf16, #tpu.memory_space<vmem>>, vector<1x16x8xbf16>
      %255 = vector.shape_cast %254 : vector<1x16x8xbf16> to vector<16x8xbf16>
      %256 = vector.shape_cast %253 : vector<16x8xbf16> to vector<1x16x8xbf16>
      tpu.vector_store %arg18[%c3_164, %c0_165, %c0_166], %256 {strides = array<i32>} : memref<4x16x8xbf16, #tpu.memory_space<vmem>>, vector<1x16x8xbf16>,
      %c3_167 = arith.constant 3 : index
      %c0_168 = arith.constant 0 : index
      %c0_169 = arith.constant 0 : index
      %257 = vector.load %arg8[%c3_167, %c0_168, %c0_169] : memref<4x32x8xbf16, #tpu.memory_space<vmem>>, vector<1x32x8xbf16>
      %258 = vector.shape_cast %257 : vector<1x32x8xbf16> to vector<32x8xbf16>
      %cst_170 = arith.constant dense<0.000000e+00> : vector<16x8xf32>
      %259 = tpu.matmul %207, %258, %cst_170 {dimension_numbers = #tpu.dot_dimension_numbers<[1], [0], [0], [1], [0, 0, 1, 1], [], []>} : vector<16x32xbf16>, vector<32x8xbf16>, vector<16x8xf32> -> vector<16x8xf32>
      %260 = arith.truncf %259 : vector<16x8xf32> to vector<16x8xbf16>
      %c3_171 = arith.constant 3 : index
      %c0_172 = arith.constant 0 : index
      %c0_173 = arith.constant 0 : index
      %261 = vector.load %arg19[%c3_171, %c0_172, %c0_173] : memref<4x16x8xbf16, #tpu.memory_space<vmem>>, vector<1x16x8xbf16>
      %262 = vector.shape_cast %261 : vector<1x16x8xbf16> to vector<16x8xbf16>
      %263 = vector.shape_cast %260 : vector<16x8xbf16> to vector<1x16x8xbf16>
      tpu.vector_store %arg19[%c3_171, %c0_172, %c0_173], %263 {strides = array<i32>} : memref<4x16x8xbf16, #tpu.memory_space<vmem>>, vector<1x16x8xbf16>,
    } else {
    }
    %c0 = arith.constant 0 : index
    %c0_1 = arith.constant 0 : index
    %c0_2 = arith.constant 0 : index
    %3 = vector.load %arg2[%c0, %c0_1, %c0_2] : memref<1x8x32xf32, #tpu.memory_space<vmem>>, vector<1x8x32xf32>
    %4 = vector.shape_cast %3 : vector<1x8x32xf32> to vector<8x32xf32>
    %c0_3 = arith.constant 0 : index
    %c0_4 = arith.constant 0 : index
    %5 = vector.load %arg4[%c0_3, %c0_4] : memref<1x32xf32, #tpu.memory_space<vmem>>, vector<1x32xf32>
    %c0_5 = arith.constant 0 : index
    %c0_6 = arith.constant 0 : index
    %6 = vector.load %arg5[%c0_5, %c0_6] : memref<1x32xf32, #tpu.memory_space<vmem>>, vector<1x32xf32>
    %cst = arith.constant dense<0.000000e+00> : vector<8xf32>
    %7 = vector.multi_reduction <add>, %4, %cst [1] : vector<8x32xf32> to vector<8xf32>
    %8 = vector.shape_cast %7 : vector<8xf32> to vector<8x1xf32>
    %cst_7 = arith.constant 3.200000e+01 : f32
    %9 = vector.broadcast %cst_7 : f32 to vector<8x1xf32>
    %10 = arith.divf %8, %9 : vector<8x1xf32>
    %11 = vector.broadcast %10 : vector<8x1xf32> to vector<8x32xf32>
    %12 = arith.subf %4, %11 : vector<8x32xf32>
    %13 = arith.mulf %12, %12 : vector<8x32xf32>
    %cst_8 = arith.constant dense<0.000000e+00> : vector<8xf32>
    %14 = vector.multi_reduction <add>, %13, %cst_8 [1] : vector<8x32xf32> to vector<8xf32>
    %15 = vector.shape_cast %14 : vector<8xf32> to vector<8x1xf32>
    %cst_9 = arith.constant 3.200000e+01 : f32
    %16 = vector.broadcast %cst_9 : f32 to vector<8x1xf32>
    %17 = arith.divf %15, %16 : vector<8x1xf32>
    %18 = vector.broadcast %10 : vector<8x1xf32> to vector<8x32xf32>
    %19 = arith.subf %4, %18 : vector<8x32xf32>
    %cst_10 = arith.constant 9.99999974E-6 : f32
    %20 = vector.broadcast %cst_10 : f32 to vector<8x1xf32>
    %21 = arith.addf %17, %20 : vector<8x1xf32>
    %22 = math.rsqrt %21 : vector<8x1xf32>
    %23 = vector.broadcast %22 : vector<8x1xf32> to vector<8x32xf32>
    %24 = arith.mulf %19, %23 : vector<8x32xf32>
    %25 = vector.broadcast %5 : vector<1x32xf32> to vector<8x32xf32>
    %26 = arith.mulf %24, %25 : vector<8x32xf32>
    %27 = vector.broadcast %6 : vector<1x32xf32> to vector<8x32xf32>
    %28 = arith.addf %26, %27 : vector<8x32xf32>
    %29 = arith.truncf %28 : vector<8x32xf32> to vector<8x32xbf16>
    %cst_11 = arith.constant 0.000000e+00 : f32
    %30 = vector.broadcast %cst_11 : f32 to vector<8x32xf32>
    %c0_12 = arith.constant 0 : index
    %c0_13 = arith.constant 0 : index
    %c0_14 = arith.constant 0 : index
    %31 = vector.load %arg6[%c0_12, %c0_13, %c0_14] : memref<4x32x8xbf16, #tpu.memory_space<vmem>>, vector<1x32x8xbf16>
    %32 = vector.shape_cast %31 : vector<1x32x8xbf16> to vector<32x8xbf16>
    %cst_15 = arith.constant dense<0.000000e+00> : vector<8x8xf32>
    %33 = tpu.matmul %29, %32, %cst_15 {dimension_numbers = #tpu.dot_dimension_numbers<[1], [0], [0], [1], [0, 0, 1, 1], [], []>} : vector<8x32xbf16>, vector<32x8xbf16>, vector<8x8xf32> -> vector<8x8xf32>
    %34 = arith.truncf %33 : vector<8x8xf32> to vector<8x8xbf16>
    %c0_16 = arith.constant 0 : index
    %c0_17 = arith.constant 0 : index
    %c0_18 = arith.constant 0 : index
    %35 = vector.load %arg18[%c0_16, %c0_17, %c0_18] : memref<4x16x8xbf16, #tpu.memory_space<vmem>>, vector<1x16x8xbf16>
    %36 = vector.shape_cast %35 : vector<1x16x8xbf16> to vector<16x8xbf16>
    %cst_19 = arith.constant dense<0.000000e+00> : vector<8x16xf32>
    %37 = tpu.matmul %34, %36, %cst_19 {dimension_numbers = #tpu.dot_dimension_numbers<[1], [1], [0], [0], [0, 0, 1, 0], [], []>} : vector<8x8xbf16>, vector<16x8xbf16>, vector<8x16xf32> -> vector<8x16xf32>
    %cst_20 = arith.constant dense<0xFF800000> : vector<8xf32>
    %38 = vector.multi_reduction <maximumf>, %37, %cst_20 [1] : vector<8x16xf32> to vector<8xf32>
    %39 = vector.shape_cast %38 : vector<8xf32> to vector<8x1xf32>
    %40 = vector.broadcast %39 : vector<8x1xf32> to vector<8x16xf32>
    %41 = arith.subf %37, %40 : vector<8x16xf32>
    %42 = math.exp %41 : vector<8x16xf32>
    %cst_21 = arith.constant dense<0.000000e+00> : vector<8xf32>
    %43 = vector.multi_reduction <add>, %42, %cst_21 [1] : vector<8x16xf32> to vector<8xf32>
    %44 = vector.shape_cast %43 : vector<8xf32> to vector<8x1xf32>
    %45 = tpu.reciprocal %44 {approx = true} : vector<8x1xf32> -> vector<8x1xf32>
    %46 = vector.broadcast %45 : vector<8x1xf32> to vector<8x16xf32>
    %47 = arith.mulf %42, %46 : vector<8x16xf32>
    %48 = arith.truncf %47 : vector<8x16xf32> to vector<8x16xbf16>
    %c0_22 = arith.constant 0 : index
    %c0_23 = arith.constant 0 : index
    %c0_24 = arith.constant 0 : index
    %49 = vector.load %arg19[%c0_22, %c0_23, %c0_24] : memref<4x16x8xbf16, #tpu.memory_space<vmem>>, vector<1x16x8xbf16>
    %50 = vector.shape_cast %49 : vector<1x16x8xbf16> to vector<16x8xbf16>
    %cst_25 = arith.constant dense<0.000000e+00> : vector<8x8xf32>
    %51 = tpu.matmul %48, %50, %cst_25 {dimension_numbers = #tpu.dot_dimension_numbers<[1], [0], [0], [1], [0, 0, 1, 1], [], []>} : vector<8x16xbf16>, vector<16x8xbf16>, vector<8x8xf32> -> vector<8x8xf32>
    %52 = arith.truncf %51 : vector<8x8xf32> to vector<8x8xbf16>
    %c0_26 = arith.constant 0 : index
    %c0_27 = arith.constant 0 : index
    %c0_28 = arith.constant 0 : index
    %53 = vector.load %arg9[%c0_26, %c0_27, %c0_28] : memref<4x8x32xbf16, #tpu.memory_space<vmem>>, vector<1x8x32xbf16>
    %54 = vector.shape_cast %53 : vector<1x8x32xbf16> to vector<8x32xbf16>
    %cst_29 = arith.constant dense<0.000000e+00> : vector<8x32xf32>
    %55 = tpu.matmul %52, %54, %cst_29 {dimension_numbers = #tpu.dot_dimension_numbers<[1], [0], [0], [1], [0, 0, 1, 1], [], []>} : vector<8x8xbf16>, vector<8x32xbf16>, vector<8x32xf32> -> vector<8x32xf32>
    %56 = arith.addf %30, %55 : vector<8x32xf32>
    %c1 = arith.constant 1 : index
    %c0_30 = arith.constant 0 : index
    %c0_31 = arith.constant 0 : index
    %57 = vector.load %arg6[%c1, %c0_30, %c0_31] : memref<4x32x8xbf16, #tpu.memory_space<vmem>>, vector<1x32x8xbf16>
    %58 = vector.shape_cast %57 : vector<1x32x8xbf16> to vector<32x8xbf16>
    %cst_32 = arith.constant dense<0.000000e+00> : vector<8x8xf32>
    %59 = tpu.matmul %29, %58, %cst_32 {dimension_numbers = #tpu.dot_dimension_numbers<[1], [0], [0], [1], [0, 0, 1, 1], [], []>} : vector<8x32xbf16>, vector<32x8xbf16>, vector<8x8xf32> -> vector<8x8xf32>
    %60 = arith.truncf %59 : vector<8x8xf32> to vector<8x8xbf16>
    %c1_33 = arith.constant 1 : index
    %c0_34 = arith.constant 0 : index
    %c0_35 = arith.constant 0 : index
    %61 = vector.load %arg18[%c1_33, %c0_34, %c0_35] : memref<4x16x8xbf16, #tpu.memory_space<vmem>>, vector<1x16x8xbf16>
    %62 = vector.shape_cast %61 : vector<1x16x8xbf16> to vector<16x8xbf16>
    %cst_36 = arith.constant dense<0.000000e+00> : vector<8x16xf32>
    %63 = tpu.matmul %60, %62, %cst_36 {dimension_numbers = #tpu.dot_dimension_numbers<[1], [1], [0], [0], [0, 0, 1, 0], [], []>} : vector<8x8xbf16>, vector<16x8xbf16>, vector<8x16xf32> -> vector<8x16xf32>
    %cst_37 = arith.constant dense<0xFF800000> : vector<8xf32>
    %64 = vector.multi_reduction <maximumf>, %63, %cst_37 [1] : vector<8x16xf32> to vector<8xf32>
    %65 = vector.shape_cast %64 : vector<8xf32> to vector<8x1xf32>
    %66 = vector.broadcast %65 : vector<8x1xf32> to vector<8x16xf32>
    %67 = arith.subf %63, %66 : vector<8x16xf32>
    %68 = math.exp %67 : vector<8x16xf32>
    %cst_38 = arith.constant dense<0.000000e+00> : vector<8xf32>
    %69 = vector.multi_reduction <add>, %68, %cst_38 [1] : vector<8x16xf32> to vector<8xf32>
    %70 = vector.shape_cast %69 : vector<8xf32> to vector<8x1xf32>
    %71 = tpu.reciprocal %70 {approx = true} : vector<8x1xf32> -> vector<8x1xf32>
    %72 = vector.broadcast %71 : vector<8x1xf32> to vector<8x16xf32>
    %73 = arith.mulf %68, %72 : vector<8x16xf32>
    %74 = arith.truncf %73 : vector<8x16xf32> to vector<8x16xbf16>
    %c1_39 = arith.constant 1 : index
    %c0_40 = arith.constant 0 : index
    %c0_41 = arith.constant 0 : index
    %75 = vector.load %arg19[%c1_39, %c0_40, %c0_41] : memref<4x16x8xbf16, #tpu.memory_space<vmem>>, vector<1x16x8xbf16>
    %76 = vector.shape_cast %75 : vector<1x16x8xbf16> to vector<16x8xbf16>
    %cst_42 = arith.constant dense<0.000000e+00> : vector<8x8xf32>
    %77 = tpu.matmul %74, %76, %cst_42 {dimension_numbers = #tpu.dot_dimension_numbers<[1], [0], [0], [1], [0, 0, 1, 1], [], []>} : vector<8x16xbf16>, vector<16x8xbf16>, vector<8x8xf32> -> vector<8x8xf32>
    %78 = arith.truncf %77 : vector<8x8xf32> to vector<8x8xbf16>
    %c1_43 = arith.constant 1 : index
    %c0_44 = arith.constant 0 : index
    %c0_45 = arith.constant 0 : index
    %79 = vector.load %arg9[%c1_43, %c0_44, %c0_45] : memref<4x8x32xbf16, #tpu.memory_space<vmem>>, vector<1x8x32xbf16>
    %80 = vector.shape_cast %79 : vector<1x8x32xbf16> to vector<8x32xbf16>
    %cst_46 = arith.constant dense<0.000000e+00> : vector<8x32xf32>
    %81 = tpu.matmul %78, %80, %cst_46 {dimension_numbers = #tpu.dot_dimension_numbers<[1], [0], [0], [1], [0, 0, 1, 1], [], []>} : vector<8x8xbf16>, vector<8x32xbf16>, vector<8x32xf32> -> vector<8x32xf32>
    %82 = arith.addf %56, %81 : vector<8x32xf32>
    %c2 = arith.constant 2 : index
    %c0_47 = arith.constant 0 : index
    %c0_48 = arith.constant 0 : index
    %83 = vector.load %arg6[%c2, %c0_47, %c0_48] : memref<4x32x8xbf16, #tpu.memory_space<vmem>>, vector<1x32x8xbf16>
    %84 = vector.shape_cast %83 : vector<1x32x8xbf16> to vector<32x8xbf16>
    %cst_49 = arith.constant dense<0.000000e+00> : vector<8x8xf32>
    %85 = tpu.matmul %29, %84, %cst_49 {dimension_numbers = #tpu.dot_dimension_numbers<[1], [0], [0], [1], [0, 0, 1, 1], [], []>} : vector<8x32xbf16>, vector<32x8xbf16>, vector<8x8xf32> -> vector<8x8xf32>
    %86 = arith.truncf %85 : vector<8x8xf32> to vector<8x8xbf16>
    %c2_50 = arith.constant 2 : index
    %c0_51 = arith.constant 0 : index
    %c0_52 = arith.constant 0 : index
    %87 = vector.load %arg18[%c2_50, %c0_51, %c0_52] : memref<4x16x8xbf16, #tpu.memory_space<vmem>>, vector<1x16x8xbf16>
    %88 = vector.shape_cast %87 : vector<1x16x8xbf16> to vector<16x8xbf16>
    %cst_53 = arith.constant dense<0.000000e+00> : vector<8x16xf32>
    %89 = tpu.matmul %86, %88, %cst_53 {dimension_numbers = #tpu.dot_dimension_numbers<[1], [1], [0], [0], [0, 0, 1, 0], [], []>} : vector<8x8xbf16>, vector<16x8xbf16>, vector<8x16xf32> -> vector<8x16xf32>
    %cst_54 = arith.constant dense<0xFF800000> : vector<8xf32>
    %90 = vector.multi_reduction <maximumf>, %89, %cst_54 [1] : vector<8x16xf32> to vector<8xf32>
    %91 = vector.shape_cast %90 : vector<8xf32> to vector<8x1xf32>
    %92 = vector.broadcast %91 : vector<8x1xf32> to vector<8x16xf32>
    %93 = arith.subf %89, %92 : vector<8x16xf32>
    %94 = math.exp %93 : vector<8x16xf32>
    %cst_55 = arith.constant dense<0.000000e+00> : vector<8xf32>
    %95 = vector.multi_reduction <add>, %94, %cst_55 [1] : vector<8x16xf32> to vector<8xf32>
    %96 = vector.shape_cast %95 : vector<8xf32> to vector<8x1xf32>
    %97 = tpu.reciprocal %96 {approx = true} : vector<8x1xf32> -> vector<8x1xf32>
    %98 = vector.broadcast %97 : vector<8x1xf32> to vector<8x16xf32>
    %99 = arith.mulf %94, %98 : vector<8x16xf32>
    %100 = arith.truncf %99 : vector<8x16xf32> to vector<8x16xbf16>
    %c2_56 = arith.constant 2 : index
    %c0_57 = arith.constant 0 : index
    %c0_58 = arith.constant 0 : index
    %101 = vector.load %arg19[%c2_56, %c0_57, %c0_58] : memref<4x16x8xbf16, #tpu.memory_space<vmem>>, vector<1x16x8xbf16>
    %102 = vector.shape_cast %101 : vector<1x16x8xbf16> to vector<16x8xbf16>
    %cst_59 = arith.constant dense<0.000000e+00> : vector<8x8xf32>
    %103 = tpu.matmul %100, %102, %cst_59 {dimension_numbers = #tpu.dot_dimension_numbers<[1], [0], [0], [1], [0, 0, 1, 1], [], []>} : vector<8x16xbf16>, vector<16x8xbf16>, vector<8x8xf32> -> vector<8x8xf32>
    %104 = arith.truncf %103 : vector<8x8xf32> to vector<8x8xbf16>
    %c2_60 = arith.constant 2 : index
    %c0_61 = arith.constant 0 : index
    %c0_62 = arith.constant 0 : index
    %105 = vector.load %arg9[%c2_60, %c0_61, %c0_62] : memref<4x8x32xbf16, #tpu.memory_space<vmem>>, vector<1x8x32xbf16>
    %106 = vector.shape_cast %105 : vector<1x8x32xbf16> to vector<8x32xbf16>
    %cst_63 = arith.constant dense<0.000000e+00> : vector<8x32xf32>
    %107 = tpu.matmul %104, %106, %cst_63 {dimension_numbers = #tpu.dot_dimension_numbers<[1], [0], [0], [1], [0, 0, 1, 1], [], []>} : vector<8x8xbf16>, vector<8x32xbf16>, vector<8x32xf32> -> vector<8x32xf32>
    %108 = arith.addf %82, %107 : vector<8x32xf32>
    %c3 = arith.constant 3 : index
    %c0_64 = arith.constant 0 : index
    %c0_65 = arith.constant 0 : index
    %109 = vector.load %arg6[%c3, %c0_64, %c0_65] : memref<4x32x8xbf16, #tpu.memory_space<vmem>>, vector<1x32x8xbf16>
    %110 = vector.shape_cast %109 : vector<1x32x8xbf16> to vector<32x8xbf16>
    %cst_66 = arith.constant dense<0.000000e+00> : vector<8x8xf32>
    %111 = tpu.matmul %29, %110, %cst_66 {dimension_numbers = #tpu.dot_dimension_numbers<[1], [0], [0], [1], [0, 0, 1, 1], [], []>} : vector<8x32xbf16>, vector<32x8xbf16>, vector<8x8xf32> -> vector<8x8xf32>
    %112 = arith.truncf %111 : vector<8x8xf32> to vector<8x8xbf16>
    %c3_67 = arith.constant 3 : index
    %c0_68 = arith.constant 0 : index
    %c0_69 = arith.constant 0 : index
    %113 = vector.load %arg18[%c3_67, %c0_68, %c0_69] : memref<4x16x8xbf16, #tpu.memory_space<vmem>>, vector<1x16x8xbf16>
    %114 = vector.shape_cast %113 : vector<1x16x8xbf16> to vector<16x8xbf16>
    %cst_70 = arith.constant dense<0.000000e+00> : vector<8x16xf32>
    %115 = tpu.matmul %112, %114, %cst_70 {dimension_numbers = #tpu.dot_dimension_numbers<[1], [1], [0], [0], [0, 0, 1, 0], [], []>} : vector<8x8xbf16>, vector<16x8xbf16>, vector<8x16xf32> -> vector<8x16xf32>
    %cst_71 = arith.constant dense<0xFF800000> : vector<8xf32>
    %116 = vector.multi_reduction <maximumf>, %115, %cst_71 [1] : vector<8x16xf32> to vector<8xf32>
    %117 = vector.shape_cast %116 : vector<8xf32> to vector<8x1xf32>
    %118 = vector.broadcast %117 : vector<8x1xf32> to vector<8x16xf32>
    %119 = arith.subf %115, %118 : vector<8x16xf32>
    %120 = math.exp %119 : vector<8x16xf32>
    %cst_72 = arith.constant dense<0.000000e+00> : vector<8xf32>
    %121 = vector.multi_reduction <add>, %120, %cst_72 [1] : vector<8x16xf32> to vector<8xf32>
    %122 = vector.shape_cast %121 : vector<8xf32> to vector<8x1xf32>
    %123 = tpu.reciprocal %122 {approx = true} : vector<8x1xf32> -> vector<8x1xf32>
    %124 = vector.broadcast %123 : vector<8x1xf32> to vector<8x16xf32>
    %125 = arith.mulf %120, %124 : vector<8x16xf32>
    %126 = arith.truncf %125 : vector<8x16xf32> to vector<8x16xbf16>
    %c3_73 = arith.constant 3 : index
    %c0_74 = arith.constant 0 : index
    %c0_75 = arith.constant 0 : index
    %127 = vector.load %arg19[%c3_73, %c0_74, %c0_75] : memref<4x16x8xbf16, #tpu.memory_space<vmem>>, vector<1x16x8xbf16>
    %128 = vector.shape_cast %127 : vector<1x16x8xbf16> to vector<16x8xbf16>
    %cst_76 = arith.constant dense<0.000000e+00> : vector<8x8xf32>
    %129 = tpu.matmul %126, %128, %cst_76 {dimension_numbers = #tpu.dot_dimension_numbers<[1], [0], [0], [1], [0, 0, 1, 1], [], []>} : vector<8x16xbf16>, vector<16x8xbf16>, vector<8x8xf32> -> vector<8x8xf32>
    %130 = arith.truncf %129 : vector<8x8xf32> to vector<8x8xbf16>
    %c3_77 = arith.constant 3 : index
    %c0_78 = arith.constant 0 : index
    %c0_79 = arith.constant 0 : index
    %131 = vector.load %arg9[%c3_77, %c0_78, %c0_79] : memref<4x8x32xbf16, #tpu.memory_space<vmem>>, vector<1x8x32xbf16>
    %132 = vector.shape_cast %131 : vector<1x8x32xbf16> to vector<8x32xbf16>
    %cst_80 = arith.constant dense<0.000000e+00> : vector<8x32xf32>
    %133 = tpu.matmul %130, %132, %cst_80 {dimension_numbers = #tpu.dot_dimension_numbers<[1], [0], [0], [1], [0, 0, 1, 1], [], []>} : vector<8x8xbf16>, vector<8x32xbf16>, vector<8x32xf32> -> vector<8x32xf32>
    %134 = arith.addf %108, %133 : vector<8x32xf32>
    %135 = arith.addf %4, %134 : vector<8x32xf32>
    %c0_81 = arith.constant 0 : index
    %c0_82 = arith.constant 0 : index
    %136 = vector.load %arg10[%c0_81, %c0_82] : memref<1x32xf32, #tpu.memory_space<vmem>>, vector<1x32xf32>
    %137 = vector.broadcast %136 : vector<1x32xf32> to vector<8x32xf32>
    %138 = arith.addf %135, %137 : vector<8x32xf32>
    %c0_83 = arith.constant 0 : index
    %c0_84 = arith.constant 0 : index
    %139 = vector.load %arg11[%c0_83, %c0_84] : memref<1x32xf32, #tpu.memory_space<vmem>>, vector<1x32xf32>
    %c0_85 = arith.constant 0 : index
    %c0_86 = arith.constant 0 : index
    %140 = vector.load %arg12[%c0_85, %c0_86] : memref<1x32xf32, #tpu.memory_space<vmem>>, vector<1x32xf32>
    %cst_87 = arith.constant dense<0.000000e+00> : vector<8xf32>
    %141 = vector.multi_reduction <add>, %138, %cst_87 [1] : vector<8x32xf32> to vector<8xf32>
    %142 = vector.shape_cast %141 : vector<8xf32> to vector<8x1xf32>
    %cst_88 = arith.constant 3.200000e+01 : f32
    %143 = vector.broadcast %cst_88 : f32 to vector<8x1xf32>
    %144 = arith.divf %142, %143 : vector<8x1xf32>
    %145 = vector.broadcast %144 : vector<8x1xf32> to vector<8x32xf32>
    %146 = arith.subf %138, %145 : vector<8x32xf32>
    %147 = arith.mulf %146, %146 : vector<8x32xf32>
    %cst_89 = arith.constant dense<0.000000e+00> : vector<8xf32>
    %148 = vector.multi_reduction <add>, %147, %cst_89 [1] : vector<8x32xf32> to vector<8xf32>
    %149 = vector.shape_cast %148 : vector<8xf32> to vector<8x1xf32>
    %cst_90 = arith.constant 3.200000e+01 : f32
    %150 = vector.broadcast %cst_90 : f32 to vector<8x1xf32>
    %151 = arith.divf %149, %150 : vector<8x1xf32>
    %152 = vector.broadcast %144 : vector<8x1xf32> to vector<8x32xf32>
    %153 = arith.subf %138, %152 : vector<8x32xf32>
    %cst_91 = arith.constant 9.99999974E-6 : f32
    %154 = vector.broadcast %cst_91 : f32 to vector<8x1xf32>
    %155 = arith.addf %151, %154 : vector<8x1xf32>
    %156 = math.rsqrt %155 : vector<8x1xf32>
    %157 = vector.broadcast %156 : vector<8x1xf32> to vector<8x32xf32>
    %158 = arith.mulf %153, %157 : vector<8x32xf32>
    %159 = vector.broadcast %139 : vector<1x32xf32> to vector<8x32xf32>
    %160 = arith.mulf %158, %159 : vector<8x32xf32>
    %161 = vector.broadcast %140 : vector<1x32xf32> to vector<8x32xf32>
    %162 = arith.addf %160, %161 : vector<8x32xf32>
    %163 = arith.truncf %162 : vector<8x32xf32> to vector<8x32xbf16>
    %c0_92 = arith.constant 0 : index
    %c0_93 = arith.constant 0 : index
    %164 = vector.load %arg13[%c0_92, %c0_93] : memref<32x128xbf16, #tpu.memory_space<vmem>>, vector<32x128xbf16>
    %cst_94 = arith.constant dense<0.000000e+00> : vector<8x128xf32>
    %165 = tpu.matmul %163, %164, %cst_94 {dimension_numbers = #tpu.dot_dimension_numbers<[1], [0], [0], [1], [0, 0, 1, 1], [], []>} : vector<8x32xbf16>, vector<32x128xbf16>, vector<8x128xf32> -> vector<8x128xf32>
    %c0_95 = arith.constant 0 : index
    %c0_96 = arith.constant 0 : index
    %166 = vector.load %arg14[%c0_95, %c0_96] : memref<1x128xf32, #tpu.memory_space<vmem>>, vector<1x128xf32>
    %167 = vector.broadcast %166 : vector<1x128xf32> to vector<8x128xf32>
    %168 = arith.addf %165, %167 : vector<8x128xf32>
    %cst_97 = arith.constant 0.000000e+00 : f32
    %169 = vector.broadcast %cst_97 : f32 to vector<8x128xf32>
    %170 = arith.maximumf %168, %169 : vector<8x128xf32>
    %171 = arith.truncf %170 : vector<8x128xf32> to vector<8x128xbf16>
    %c0_98 = arith.constant 0 : index
    %c0_99 = arith.constant 0 : index
    %172 = vector.load %arg15[%c0_98, %c0_99] : memref<128x32xbf16, #tpu.memory_space<vmem>>, vector<128x32xbf16>
    %cst_100 = arith.constant dense<0.000000e+00> : vector<8x32xf32>
    %173 = tpu.matmul %171, %172, %cst_100 {dimension_numbers = #tpu.dot_dimension_numbers<[1], [0], [0], [1], [0, 0, 1, 1], [], []>} : vector<8x128xbf16>, vector<128x32xbf16>, vector<8x32xf32> -> vector<8x32xf32>
    %c0_101 = arith.constant 0 : index
    %c0_102 = arith.constant 0 : index
    %174 = vector.load %arg16[%c0_101, %c0_102] : memref<1x32xf32, #tpu.memory_space<vmem>>, vector<1x32xf32>
    %175 = vector.broadcast %174 : vector<1x32xf32> to vector<8x32xf32>
    %176 = arith.addf %173, %175 : vector<8x32xf32>
    %177 = arith.addf %138, %176 : vector<8x32xf32>
    %c0_103 = arith.constant 0 : index
    %c0_104 = arith.constant 0 : index
    %c0_105 = arith.constant 0 : index
    %178 = vector.load %arg17[%c0_103, %c0_104, %c0_105] : memref<1x8x32xf32, #tpu.memory_space<vmem>>, vector<1x8x32xf32>
    %179 = vector.shape_cast %178 : vector<1x8x32xf32> to vector<8x32xf32>
    %180 = vector.shape_cast %177 : vector<8x32xf32> to vector<1x8x32xf32>
    tpu.vector_store %arg17[%c0_103, %c0_104, %c0_105], %180 {strides = array<i32>} : memref<1x8x32xf32, #tpu.memory_space<vmem>>, vector<1x8x32xf32>,
    return
  }
  func.func @transform_0(%arg0: i32, %arg1: i32) -> (i32, i32, i32) {
    %c0_i32 = arith.constant 0 : i32
    %c0_i32_0 = arith.constant 0 : i32
    return %arg0, %arg1, %c0_i32 : i32, i32, i32
  }
  func.func @transform_1(%arg0: i32, %arg1: i32) -> (i32, i32, i32) {
    %c0_i32 = arith.constant 0 : i32
    %c0_i32_0 = arith.constant 0 : i32
    %c0_i32_1 = arith.constant 0 : i32
    return %arg0, %c0_i32, %c0_i32_0 : i32, i32, i32
  }
  func.func @transform_2(%arg0: i32, %arg1: i32) -> (i32, i32) {
    %c0_i32 = arith.constant 0 : i32
    %c0_i32_0 = arith.constant 0 : i32
    %c0_i32_1 = arith.constant 0 : i32
    return %c0_i32, %c0_i32_0 : i32, i32
  }
  func.func @transform_3(%arg0: i32, %arg1: i32) -> (i32, i32) {
    %c0_i32 = arith.constant 0 : i32
    %c0_i32_0 = arith.constant 0 : i32
    %c0_i32_1 = arith.constant 0 : i32
    return %c0_i32, %c0_i32_0 : i32, i32
  }
  func.func @transform_4(%arg0: i32, %arg1: i32) -> (i32, i32, i32) {
    %c0_i32 = arith.constant 0 : i32
    %c0_i32_0 = arith.constant 0 : i32
    %c0_i32_1 = arith.constant 0 : i32
    %c0_i32_2 = arith.constant 0 : i32
    return %c0_i32, %c0_i32_0, %c0_i32_1 : i32, i32, i32
  }
  func.func @transform_5(%arg0: i32, %arg1: i32) -> (i32, i32, i32) {
    %c0_i32 = arith.constant 0 : i32
    %c0_i32_0 = arith.constant 0 : i32
    %c0_i32_1 = arith.constant 0 : i32
    %c0_i32_2 = arith.constant 0 : i32
    return %c0_i32, %c0_i32_0, %c0_i32_1 : i32, i32, i32
  }
  func.func @transform_6(%arg0: i32, %arg1: i32) -> (i32, i32, i32) {
    %c0_i32 = arith.constant 0 : i32
    %c0_i32_0 = arith.constant 0 : i32
    %c0_i32_1 = arith.constant 0 : i32
    %c0_i32_2 = arith.constant 0 : i32
    return %c0_i32, %c0_i32_0, %c0_i32_1 : i32, i32, i32
  }
  func.func @transform_7(%arg0: i32, %arg1: i32) -> (i32, i32, i32) {
    %c0_i32 = arith.constant 0 : i32
    %c0_i32_0 = arith.constant 0 : i32
    %c0_i32_1 = arith.constant 0 : i32
    %c0_i32_2 = arith.constant 0 : i32
    return %c0_i32, %c0_i32_0, %c0_i32_1 : i32, i32, i32
  }
  func.func @transform_8(%arg0: i32, %arg1: i32) -> (i32, i32) {
    %c0_i32 = arith.constant 0 : i32
    %c0_i32_0 = arith.constant 0 : i32
    %c0_i32_1 = arith.constant 0 : i32
    return %c0_i32, %c0_i32_0 : i32, i32
  }
  func.func @transform_9(%arg0: i32, %arg1: i32) -> (i32, i32) {
    %c0_i32 = arith.constant 0 : i32
    %c0_i32_0 = arith.constant 0 : i32
    %c0_i32_1 = arith.constant 0 : i32
    return %c0_i32, %c0_i32_0 : i32, i32
  }
  func.func @transform_10(%arg0: i32, %arg1: i32) -> (i32, i32) {
    %c0_i32 = arith.constant 0 : i32
    %c0_i32_0 = arith.constant 0 : i32
    %c0_i32_1 = arith.constant 0 : i32
    return %c0_i32, %c0_i32_0 : i32, i32
  }
  func.func @transform_11(%arg0: i32, %arg1: i32) -> (i32, i32) {
    %c0_i32 = arith.constant 0 : i32
    %c0_i32_0 = arith.constant 0 : i32
    %c0_i32_1 = arith.constant 0 : i32
    return %c0_i32, %c0_i32_0 : i32, i32
  }
  func.func @transform_12(%arg0: i32, %arg1: i32) -> (i32, i32) {
    %c0_i32 = arith.constant 0 : i32
    %c0_i32_0 = arith.constant 0 : i32
    %c0_i32_1 = arith.constant 0 : i32
    return %c0_i32, %c0_i32_0 : i32, i32
  }
  func.func @transform_13(%arg0: i32, %arg1: i32) -> (i32, i32) {
    %c0_i32 = arith.constant 0 : i32
    %c0_i32_0 = arith.constant 0 : i32
    %c0_i32_1 = arith.constant 0 : i32
    return %c0_i32, %c0_i32_0 : i32, i32
  }
  func.func @transform_14(%arg0: i32, %arg1: i32) -> (i32, i32) {
    %c0_i32 = arith.constant 0 : i32
    %c0_i32_0 = arith.constant 0 : i32
    %c0_i32_1 = arith.constant 0 : i32
    return %c0_i32, %c0_i32_0 : i32, i32
  }
  func.func @transform_15(%arg0: i32, %arg1: i32) -> (i32, i32, i32) {
    %c0_i32 = arith.constant 0 : i32
    %c0_i32_0 = arith.constant 0 : i32
    return %arg0, %arg1, %c0_i32 : i32, i32, i32
  }
}

</mosaic_0001>

<llo_original>
// kernel: tpu_custom_call.1
$region0: #{tpu_custom_call.1}
  #allocation0 [shape = 'u32[]', space=smem, size = 0x4, offset = 0x4, fixed_abs, tag = 'smem constant byte address 0x4 - core index']
  #allocation1 [shape = 'u32[144,128]{1,0:T(1,128)}', space=vmem, size = 0x12000, scoped, tag = 'internal scratch']
  #allocation2 [shape = 'bf16[4,16,8]{2,1,0:T(16,128)(2,1)}', space=vmem, size = 0x4000, scoped, tag = 'scratch operand']
  #allocation3 [shape = 'bf16[4,16,8]{2,1,0:T(16,128)(2,1)}', space=vmem, size = 0x4000, scoped, tag = 'scratch operand']
  %s0 = inlined_call_operand.vmem [shape: f32[2,16,32], index: 0, kind: input, shape index: {}]
  %s1 = inlined_call_operand.vmem [shape: f32[2,16,32], index: 1, kind: input, shape index: {}]
  %s2 = inlined_call_operand.vmem [shape: f32[1,32], index: 2, kind: input, shape index: {}]
  %s3 = inlined_call_operand.vmem [shape: f32[1,32], index: 3, kind: input, shape index: {}]
  %s4 = inlined_call_operand.vmem [shape: bf16[4,32,8], index: 4, kind: input, shape index: {}]
  %s5 = inlined_call_operand.vmem [shape: bf16[4,32,8], index: 5, kind: input, shape index: {}]
  %s6 = inlined_call_operand.vmem [shape: bf16[4,32,8], index: 6, kind: input, shape index: {}]
  %s7 = inlined_call_operand.vmem [shape: bf16[4,8,32], index: 7, kind: input, shape index: {}]
  %s8 = inlined_call_operand.vmem [shape: f32[1,32], index: 8, kind: input, shape index: {}]
  %s9 = inlined_call_operand.vmem [shape: f32[1,32], index: 9, kind: input, shape index: {}]
  %s10 = inlined_call_operand.vmem [shape: f32[1,32], index: 10, kind: input, shape index: {}]
  %s11 = inlined_call_operand.vmem [shape: bf16[32,128], index: 11, kind: input, shape index: {}]
  %s12 = inlined_call_operand.vmem [shape: f32[1,128], index: 12, kind: input, shape index: {}]
  %s13 = inlined_call_operand.vmem [shape: bf16[128,32], index: 13, kind: input, shape index: {}]
  %s14 = inlined_call_operand.vmem [shape: f32[1,32], index: 14, kind: input, shape index: {}]
  %s15 = inlined_call_operand.hbm [shape: f32[2,16,32], index: 15, kind: output, shape index: {}]
  %s16 = sld [smem:[#allocation0]]
  $region97: #{tpu_custom_call.1} parent=0
    _
  %s18 = ssub.s32 1, %s16
  %s19 = scalar_select 0, %s18, %s16
  $region1: #{tpu_custom_call.1} parent=0
    #allocation4 [shape = 'u8[8192]{0}', space=vmem, size = 0x2000, scoped, tag = 'output window, operand 0']
    #allocation5 [shape = 's32[2]{0}', space=sflag, size = 0x8, scoped, tag = 'scoped memory for tpu_custom_call.1']
    %20 = vsyncpa [#allocation5], 0
    %s21 = scalar_lea.sflag [#allocation5], 1
    %22 = vsyncpa %s21, 0
    loop: start=0, step=1, limit=6
    $region2: #{tpu_custom_call.1} parent=1 // loop_pre_header
      _
    $region3: #{tpu_custom_call.1} parent=1 // loop_header
      %s24 = sphi 0, %s28
      %p25 = scmp.ge.s32.totalorder %s24, 6
      %s31 = sphi 0, %s43
      %s32 = sphi 0, %s39
      %s33 = sphi 0, %s31
      %s34 = sphi 0, %s32
      %s35 = sphi 0, %s33
      %s36 = sphi 0, %s34
      %s48 = sphi 0, %s50
      %s51 = sphi 0, %s48
      %s52 = sphi 0, %s51
      %s68 = sphi 0, %s52
      %s74 = sphi 0, %s76
      %s77 = sphi 0, %s74
      %s78 = sphi 0, %s77
      %s94 = sphi 0, %s78
      %s98 = sphi 0, %s98
      %s100 = sphi 0, %s98
      %s101 = sphi 0, %s100
      %s115 = sphi 0, %s101
      %s119 = sphi 0, %s119
      %s121 = sphi 0, %s119
      %s122 = sphi 0, %s121
      %s136 = sphi 0, %s122
      %s140 = sphi 0, %s140
      %s142 = sphi 0, %s140
      %s143 = sphi 0, %s142
      %s157 = sphi 0, %s143
      %s161 = sphi 0, %s161
      %s163 = sphi 0, %s161
      %s164 = sphi 0, %s163
      %s178 = sphi 0, %s164
      %s182 = sphi 0, %s182
      %s184 = sphi 0, %s182
      %s185 = sphi 0, %s184
      %s199 = sphi 0, %s185
      %s203 = sphi 0, %s203
      %s205 = sphi 0, %s203
      %s206 = sphi 0, %s205
      %s220 = sphi 0, %s206
      %s224 = sphi 0, %s224
      %s226 = sphi 0, %s224
      %s227 = sphi 0, %s226
      %s241 = sphi 0, %s227
      %s245 = sphi 0, %s245
      %s247 = sphi 0, %s245
      %s248 = sphi 0, %s247
      %s262 = sphi 0, %s248
      %s266 = sphi 0, %s266
      %s268 = sphi 0, %s266
      %s269 = sphi 0, %s268
      %s283 = sphi 0, %s269
      %s287 = sphi 0, %s287
      %s289 = sphi 0, %s287
      %s290 = sphi 0, %s289
      %s304 = sphi 0, %s290
      %s308 = sphi 0, %s308
      %s310 = sphi 0, %s308
      %s311 = sphi 0, %s310
      %s325 = sphi 0, %s311
      %s329 = sphi 0, %s329
      %s331 = sphi 0, %s329
      %s332 = sphi 0, %s331
      %s346 = sphi 0, %s332
      %s350 = sphi 0, %s350
      %s352 = sphi 0, %s350
      %s353 = sphi 0, %s352
      %s367 = sphi 0, %s353
      %s375 = sphi 0, %s377
      %s378 = sphi 0, %s375
      %s379 = sphi 0, %s378
      %s395 = sphi 0, %s379
    $region4: #{tpu_custom_call.1} parent=1 // loop_header_branch
      %27 = sbr.rel (%p25) target = $region8
    $region5: #{tpu_custom_call.1} parent=1 // loop_body
      %s29 = ssub.s32 %s24, 1
      %s30 = ssub.s32 %s24, 2
      %s37 = sadd.s32 1, %s32
      %p38 = scmp.ge.s32.totalorder %s37, 2
      %s39 = scalar_select %p38, 0, %s37
      %s40 = sadd.s32 1, %s31
      %s41 = scalar_select %p38, %s40, %s31
      %p42 = scmp.ge.s32.totalorder %s41, 2
      %s43 = scalar_select %p42, 0, %s41
      %s44 = ssub.s32 %s31, %s43
      %s45 = ssub.s32 %s32, %s39
      %s46 = sor.u32 %s44, %s45
      %p47 = scmp.eq.s32.totalorder %s46, 0
      %s49 = sadd.s32 %s48, 1
      %s50 = scalar_select %p47, %s48, %s49
      %p53 = pneg %p47
      %p54 = scmp.eq.s32.totalorder %s24, 3
      %p55 = por %p53, %p54
      %p56 = scmp.ne.s32.totalorder %s48, %s51
      %p57 = scmp.eq.s32.totalorder %s24, 0
      %p58 = por %p56, %p57
      %p59 = scmp.ne.s32.totalorder %s48, %s51
      %p60 = scmp.eq.s32.totalorder %s29, 3
      %p61 = por %p59, %p60
      %p62 = scmp.ne.s32.totalorder %s51, %s52
      %p63 = scmp.eq.s32.totalorder %s29, 0
      %p64 = por %p62, %p63
      %p65 = scmp.ne.s32.totalorder %s51, %s52
      %p66 = scmp.eq.s32.totalorder %s30, 3
      %p67 = por %p65, %p66
      %p69 = scmp.ne.s32.totalorder %s52, %s68
      %p70 = scmp.eq.s32.totalorder %s30, 0
      %p71 = por %p69, %p70
      %s72 = ssub.s32 %s31, %s43
      %p73 = scmp.eq.s32.totalorder %s72, 0
      %s75 = sadd.s32 %s74, 1
      %s76 = scalar_select %p73, %s74, %s75
      %p79 = pneg %p73
      %p80 = scmp.eq.s32.totalorder %s24, 3
      %p81 = por %p79, %p80
      %p82 = scmp.ne.s32.totalorder %s74, %s77
      %p83 = scmp.eq.s32.totalorder %s24, 0
      %p84 = por %p82, %p83
      %p85 = scmp.ne.s32.totalorder %s74, %s77
      %p86 = scmp.eq.s32.totalorder %s29, 3
      %p87 = por %p85, %p86
      %p88 = scmp.ne.s32.totalorder %s77, %s78
      %p89 = scmp.eq.s32.totalorder %s29, 0
      %p90 = por %p88, %p89
      %p91 = scmp.ne.s32.totalorder %s77, %s78
      %p92 = scmp.eq.s32.totalorder %s30, 3
      %p93 = por %p91, %p92
      %p95 = scmp.ne.s32.totalorder %s78, %s94
      %p96 = scmp.eq.s32.totalorder %s30, 0
      %p97 = por %p95, %p96
      %s99 = sadd.s32 %s98, 1
      %p102 = scmp.eq.s32.totalorder %s24, 3
      %p103 = scmp.ne.s32.totalorder %s98, %s100
      %p104 = scmp.eq.s32.totalorder %s24, 0
      %p105 = por %p103, %p104
      %p106 = scmp.ne.s32.totalorder %s98, %s100
      %p107 = scmp.eq.s32.totalorder %s29, 3
      %p108 = por %p106, %p107
      %p109 = scmp.ne.s32.totalorder %s100, %s101
      %p110 = scmp.eq.s32.totalorder %s29, 0
      %p111 = por %p109, %p110
      %p112 = scmp.ne.s32.totalorder %s100, %s101
      %p113 = scmp.eq.s32.totalorder %s30, 3
      %p114 = por %p112, %p113
      %p116 = scmp.ne.s32.totalorder %s101, %s115
      %p117 = scmp.eq.s32.totalorder %s30, 0
      %p118 = por %p116, %p117
      %s120 = sadd.s32 %s119, 1
      %p123 = scmp.eq.s32.totalorder %s24, 3
      %p124 = scmp.ne.s32.totalorder %s119, %s121
      %p125 = scmp.eq.s32.totalorder %s24, 0
      %p126 = por %p124, %p125
      %p127 = scmp.ne.s32.totalorder %s119, %s121
      %p128 = scmp.eq.s32.totalorder %s29, 3
      %p129 = por %p127, %p128
      %p130 = scmp.ne.s32.totalorder %s121, %s122
      %p131 = scmp.eq.s32.totalorder %s29, 0
      %p132 = por %p130, %p131
      %p133 = scmp.ne.s32.totalorder %s121, %s122
      %p134 = scmp.eq.s32.totalorder %s30, 3
      %p135 = por %p133, %p134
      %p137 = scmp.ne.s32.totalorder %s122, %s136
      %p138 = scmp.eq.s32.totalorder %s30, 0
      %p139 = por %p137, %p138
      %s141 = sadd.s32 %s140, 1
      %p144 = scmp.eq.s32.totalorder %s24, 3
      %p145 = scmp.ne.s32.totalorder %s140, %s142
      %p146 = scmp.eq.s32.totalorder %s24, 0
      %p147 = por %p145, %p146
      %p148 = scmp.ne.s32.totalorder %s140, %s142
      %p149 = scmp.eq.s32.totalorder %s29, 3
      %p150 = por %p148, %p149
      %p151 = scmp.ne.s32.totalorder %s142, %s143
      %p152 = scmp.eq.s32.totalorder %s29, 0
      %p153 = por %p151, %p152
      %p154 = scmp.ne.s32.totalorder %s142, %s143
      %p155 = scmp.eq.s32.totalorder %s30, 3
      %p156 = por %p154, %p155
      %p158 = scmp.ne.s32.totalorder %s143, %s157
      %p159 = scmp.eq.s32.totalorder %s30, 0
      %p160 = por %p158, %p159
      %s162 = sadd.s32 %s161, 1
      %p165 = scmp.eq.s32.totalorder %s24, 3
      %p166 = scmp.ne.s32.totalorder %s161, %s163
      %p167 = scmp.eq.s32.totalorder %s24, 0
      %p168 = por %p166, %p167
      %p169 = scmp.ne.s32.totalorder %s161, %s163
      %p170 = scmp.eq.s32.totalorder %s29, 3
      %p171 = por %p169, %p170
      %p172 = scmp.ne.s32.totalorder %s163, %s164
      %p173 = scmp.eq.s32.totalorder %s29, 0
      %p174 = por %p172, %p173
      %p175 = scmp.ne.s32.totalorder %s163, %s164
      %p176 = scmp.eq.s32.totalorder %s30, 3
      %p177 = por %p175, %p176
      %p179 = scmp.ne.s32.totalorder %s164, %s178
      %p180 = scmp.eq.s32.totalorder %s30, 0
      %p181 = por %p179, %p180
      %s183 = sadd.s32 %s182, 1
      %p186 = scmp.eq.s32.totalorder %s24, 3
      %p187 = scmp.ne.s32.totalorder %s182, %s184
      %p188 = scmp.eq.s32.totalorder %s24, 0
      %p189 = por %p187, %p188
      %p190 = scmp.ne.s32.totalorder %s182, %s184
      %p191 = scmp.eq.s32.totalorder %s29, 3
      %p192 = por %p190, %p191
      %p193 = scmp.ne.s32.totalorder %s184, %s185
      %p194 = scmp.eq.s32.totalorder %s29, 0
      %p195 = por %p193, %p194
      %p196 = scmp.ne.s32.totalorder %s184, %s185
      %p197 = scmp.eq.s32.totalorder %s30, 3
      %p198 = por %p196, %p197
      %p200 = scmp.ne.s32.totalorder %s185, %s199
      %p201 = scmp.eq.s32.totalorder %s30, 0
      %p202 = por %p200, %p201
      %s204 = sadd.s32 %s203, 1
      %p207 = scmp.eq.s32.totalorder %s24, 3
      %p208 = scmp.ne.s32.totalorder %s203, %s205
      %p209 = scmp.eq.s32.totalorder %s24, 0
      %p210 = por %p208, %p209
      %p211 = scmp.ne.s32.totalorder %s203, %s205
      %p212 = scmp.eq.s32.totalorder %s29, 3
      %p213 = por %p211, %p212
      %p214 = scmp.ne.s32.totalorder %s205, %s206
      %p215 = scmp.eq.s32.totalorder %s29, 0
      %p216 = por %p214, %p215
      %p217 = scmp.ne.s32.totalorder %s205, %s206
      %p218 = scmp.eq.s32.totalorder %s30, 3
      %p219 = por %p217, %p218
      %p221 = scmp.ne.s32.totalorder %s206, %s220
      %p222 = scmp.eq.s32.totalorder %s30, 0
      %p223 = por %p221, %p222
      %s225 = sadd.s32 %s224, 1
      %p228 = scmp.eq.s32.totalorder %s24, 3
      %p229 = scmp.ne.s32.totalorder %s224, %s226
      %p230 = scmp.eq.s32.totalorder %s24, 0
      %p231 = por %p229, %p230
      %p232 = scmp.ne.s32.totalorder %s224, %s226
      %p233 = scmp.eq.s32.totalorder %s29, 3
      %p234 = por %p232, %p233
      %p235 = scmp.ne.s32.totalorder %s226, %s227
      %p236 = scmp.eq.s32.totalorder %s29, 0
      %p237 = por %p235, %p236
      %p238 = scmp.ne.s32.totalorder %s226, %s227
      %p239 = scmp.eq.s32.totalorder %s30, 3
      %p240 = por %p238, %p239
      %p242 = scmp.ne.s32.totalorder %s227, %s241
      %p243 = scmp.eq.s32.totalorder %s30, 0
      %p244 = por %p242, %p243
      %s246 = sadd.s32 %s245, 1
      %p249 = scmp.eq.s32.totalorder %s24, 3
      %p250 = scmp.ne.s32.totalorder %s245, %s247
      %p251 = scmp.eq.s32.totalorder %s24, 0
      %p252 = por %p250, %p251
      %p253 = scmp.ne.s32.totalorder %s245, %s247
      %p254 = scmp.eq.s32.totalorder %s29, 3
      %p255 = por %p253, %p254
      %p256 = scmp.ne.s32.totalorder %s247, %s248
      %p257 = scmp.eq.s32.totalorder %s29, 0
      %p258 = por %p256, %p257
      %p259 = scmp.ne.s32.totalorder %s247, %s248
      %p260 = scmp.eq.s32.totalorder %s30, 3
      %p261 = por %p259, %p260
      %p263 = scmp.ne.s32.totalorder %s248, %s262
      %p264 = scmp.eq.s32.totalorder %s30, 0
      %p265 = por %p263, %p264
      %s267 = sadd.s32 %s266, 1
      %p270 = scmp.eq.s32.totalorder %s24, 3
      %p271 = scmp.ne.s32.totalorder %s266, %s268
      %p272 = scmp.eq.s32.totalorder %s24, 0
      %p273 = por %p271, %p272
      %p274 = scmp.ne.s32.totalorder %s266, %s268
      %p275 = scmp.eq.s32.totalorder %s29, 3
      %p276 = por %p274, %p275
      %p277 = scmp.ne.s32.totalorder %s268, %s269
      %p278 = scmp.eq.s32.totalorder %s29, 0
      %p279 = por %p277, %p278
      %p280 = scmp.ne.s32.totalorder %s268, %s269
      %p281 = scmp.eq.s32.totalorder %s30, 3
      %p282 = por %p280, %p281
      %p284 = scmp.ne.s32.totalorder %s269, %s283
      %p285 = scmp.eq.s32.totalorder %s30, 0
      %p286 = por %p284, %p285
      %s288 = sadd.s32 %s287, 1
      %p291 = scmp.eq.s32.totalorder %s24, 3
      %p292 = scmp.ne.s32.totalorder %s287, %s289
      %p293 = scmp.eq.s32.totalorder %s24, 0
      %p294 = por %p292, %p293
      %p295 = scmp.ne.s32.totalorder %s287, %s289
      %p296 = scmp.eq.s32.totalorder %s29, 3
      %p297 = por %p295, %p296
      %p298 = scmp.ne.s32.totalorder %s289, %s290
      %p299 = scmp.eq.s32.totalorder %s29, 0
      %p300 = por %p298, %p299
      %p301 = scmp.ne.s32.totalorder %s289, %s290
      %p302 = scmp.eq.s32.totalorder %s30, 3
      %p303 = por %p301, %p302
      %p305 = scmp.ne.s32.totalorder %s290, %s304
      %p306 = scmp.eq.s32.totalorder %s30, 0
      %p307 = por %p305, %p306
      %s309 = sadd.s32 %s308, 1
      %p312 = scmp.eq.s32.totalorder %s24, 3
      %p313 = scmp.ne.s32.totalorder %s308, %s310
      %p314 = scmp.eq.s32.totalorder %s24, 0
      %p315 = por %p313, %p314
      %p316 = scmp.ne.s32.totalorder %s308, %s310
      %p317 = scmp.eq.s32.totalorder %s29, 3
      %p318 = por %p316, %p317
      %p319 = scmp.ne.s32.totalorder %s310, %s311
      %p320 = scmp.eq.s32.totalorder %s29, 0
      %p321 = por %p319, %p320
      %p322 = scmp.ne.s32.totalorder %s310, %s311
      %p323 = scmp.eq.s32.totalorder %s30, 3
      %p324 = por %p322, %p323
      %p326 = scmp.ne.s32.totalorder %s311, %s325
      %p327 = scmp.eq.s32.totalorder %s30, 0
      %p328 = por %p326, %p327
      %s330 = sadd.s32 %s329, 1
      %p333 = scmp.eq.s32.totalorder %s24, 3
      %p334 = scmp.ne.s32.totalorder %s329, %s331
      %p335 = scmp.eq.s32.totalorder %s24, 0
      %p336 = por %p334, %p335
      %p337 = scmp.ne.s32.totalorder %s329, %s331
      %p338 = scmp.eq.s32.totalorder %s29, 3
      %p339 = por %p337, %p338
      %p340 = scmp.ne.s32.totalorder %s331, %s332
      %p341 = scmp.eq.s32.totalorder %s29, 0
      %p342 = por %p340, %p341
      %p343 = scmp.ne.s32.totalorder %s331, %s332
      %p344 = scmp.eq.s32.totalorder %s30, 3
      %p345 = por %p343, %p344
      %p347 = scmp.ne.s32.totalorder %s332, %s346
      %p348 = scmp.eq.s32.totalorder %s30, 0
      %p349 = por %p347, %p348
      %s351 = sadd.s32 %s350, 1
      %p354 = scmp.eq.s32.totalorder %s24, 3
      %p355 = scmp.ne.s32.totalorder %s350, %s352
      %p356 = scmp.eq.s32.totalorder %s24, 0
      %p357 = por %p355, %p356
      %p358 = scmp.ne.s32.totalorder %s350, %s352
      %p359 = scmp.eq.s32.totalorder %s29, 3
      %p360 = por %p358, %p359
      %p361 = scmp.ne.s32.totalorder %s352, %s353
      %p362 = scmp.eq.s32.totalorder %s29, 0
      %p363 = por %p361, %p362
      %p364 = scmp.ne.s32.totalorder %s352, %s353
      %p365 = scmp.eq.s32.totalorder %s30, 3
      %p366 = por %p364, %p365
      %p368 = scmp.ne.s32.totalorder %s353, %s367
      %p369 = scmp.eq.s32.totalorder %s30, 0
      %p370 = por %p368, %p369
      %s371 = ssub.s32 %s31, %s43
      %s372 = ssub.s32 %s32, %s39
      %s373 = sor.u32 %s371, %s372
      %p374 = scmp.eq.s32.totalorder %s373, 0
      %s376 = sadd.s32 %s375, 1
      %s377 = scalar_select %p374, %s375, %s376
      %p380 = pneg %p374
      %p381 = scmp.eq.s32.totalorder %s24, 3
      %p382 = por %p380, %p381
      %p383 = scmp.ne.s32.totalorder %s375, %s378
      %p384 = scmp.eq.s32.totalorder %s24, 0
      %p385 = por %p383, %p384
      %p386 = scmp.ne.s32.totalorder %s375, %s378
      %p387 = scmp.eq.s32.totalorder %s29, 3
      %p388 = por %p386, %p387
      %p389 = scmp.ne.s32.totalorder %s378, %s379
      %p390 = scmp.eq.s32.totalorder %s29, 0
      %p391 = por %p389, %p390
      %p392 = scmp.ne.s32.totalorder %s378, %s379
      %p393 = scmp.eq.s32.totalorder %s30, 3
      %p394 = por %p392, %p393
      %p396 = scmp.ne.s32.totalorder %s379, %s395
      %p397 = scmp.eq.s32.totalorder %s30, 0
      %p398 = por %p396, %p397
      %p399 = scmp.le.s32.totalorder 1, %s24
      %p400 = scmp.lt.s32.totalorder %s24, 5
      %p401 = pnand %p399, %p400
      %p402 = pneg %p401
      // Predicated region
      $region9: #{tpu_custom_call.1} parent=5 // pred_check
        _
      $region10: #{tpu_custom_call.1} parent=5 // pred_check_branch
        %404 = sbr.rel (%p401) target = $region12
      $region11: #{tpu_custom_call.1} parent=5 // pred_region
        %s405 = ssub.s32 %s24, 1
        // Predicated region
        $region13: #{tpu_custom_call.1} parent=11 // pred_check
          %p406 = pneg %p111
        $region14: #{tpu_custom_call.1} parent=11 // pred_check_branch
          %408 = sbr.rel (%p406) target = $region16
        $region15: #{tpu_custom_call.1} parent=11 // pred_region
          _
        $region16: #{tpu_custom_call.1} parent=11 // pred_fallthru
          _
        // Predicated region
        $region17: #{tpu_custom_call.1} parent=11 // pred_check
          %p409 = pneg %p132
        $region18: #{tpu_custom_call.1} parent=11 // pred_check_branch
          %411 = sbr.rel (%p409) target = $region20
        $region19: #{tpu_custom_call.1} parent=11 // pred_region
          _
        $region20: #{tpu_custom_call.1} parent=11 // pred_fallthru
          _
        // Predicated region
        $region21: #{tpu_custom_call.1} parent=11 // pred_check
          %p412 = pneg %p153
        $region22: #{tpu_custom_call.1} parent=11 // pred_check_branch
          %414 = sbr.rel (%p412) target = $region24
        $region23: #{tpu_custom_call.1} parent=11 // pred_region
          _
        $region24: #{tpu_custom_call.1} parent=11 // pred_fallthru
          _
        // Predicated region
        $region25: #{tpu_custom_call.1} parent=11 // pred_check
          %p415 = pneg %p174
        $region26: #{tpu_custom_call.1} parent=11 // pred_check_branch
          %417 = sbr.rel (%p415) target = $region28
        $region27: #{tpu_custom_call.1} parent=11 // pred_region
          _
        $region28: #{tpu_custom_call.1} parent=11 // pred_fallthru
          _
        // Predicated region
        $region29: #{tpu_custom_call.1} parent=11 // pred_check
          %p418 = pneg %p195
        $region30: #{tpu_custom_call.1} parent=11 // pred_check_branch
          %420 = sbr.rel (%p418) target = $region32
        $region31: #{tpu_custom_call.1} parent=11 // pred_region
          _
        $region32: #{tpu_custom_call.1} parent=11 // pred_fallthru
          _
        // Predicated region
        $region33: #{tpu_custom_call.1} parent=11 // pred_check
          %p421 = pneg %p216
        $region34: #{tpu_custom_call.1} parent=11 // pred_check_branch
          %423 = sbr.rel (%p421) target = $region36
        $region35: #{tpu_custom_call.1} parent=11 // pred_region
          _
        $region36: #{tpu_custom_call.1} parent=11 // pred_fallthru
          _
        // Predicated region
        $region37: #{tpu_custom_call.1} parent=11 // pred_check
          %p424 = pneg %p237
        $region38: #{tpu_custom_call.1} parent=11 // pred_check_branch
          %426 = sbr.rel (%p424) target = $region40
        $region39: #{tpu_custom_call.1} parent=11 // pred_region
          _
        $region40: #{tpu_custom_call.1} parent=11 // pred_fallthru
          _
        // Predicated region
        $region41: #{tpu_custom_call.1} parent=11 // pred_check
          %p427 = pneg %p258
        $region42: #{tpu_custom_call.1} parent=11 // pred_check_branch
          %429 = sbr.rel (%p427) target = $region44
        $region43: #{tpu_custom_call.1} parent=11 // pred_region
          _
        $region44: #{tpu_custom_call.1} parent=11 // pred_fallthru
          _
        // Predicated region
        $region45: #{tpu_custom_call.1} parent=11 // pred_check
          %p430 = pneg %p279
        $region46: #{tpu_custom_call.1} parent=11 // pred_check_branch
          %432 = sbr.rel (%p430) target = $region48
        $region47: #{tpu_custom_call.1} parent=11 // pred_region
          _
        $region48: #{tpu_custom_call.1} parent=11 // pred_fallthru
          _
        // Predicated region
        $region49: #{tpu_custom_call.1} parent=11 // pred_check
          %p433 = pneg %p300
        $region50: #{tpu_custom_call.1} parent=11 // pred_check_branch
          %435 = sbr.rel (%p433) target = $region52
        $region51: #{tpu_custom_call.1} parent=11 // pred_region
          _
        $region52: #{tpu_custom_call.1} parent=11 // pred_fallthru
          _
        // Predicated region
        $region53: #{tpu_custom_call.1} parent=11 // pred_check
          %p436 = pneg %p321
        $region54: #{tpu_custom_call.1} parent=11 // pred_check_branch
          %438 = sbr.rel (%p436) target = $region56
        $region55: #{tpu_custom_call.1} parent=11 // pred_region
          _
        $region56: #{tpu_custom_call.1} parent=11 // pred_fallthru
          _
        // Predicated region
        $region57: #{tpu_custom_call.1} parent=11 // pred_check
          %p439 = pneg %p342
        $region58: #{tpu_custom_call.1} parent=11 // pred_check_branch
          %441 = sbr.rel (%p439) target = $region60
        $region59: #{tpu_custom_call.1} parent=11 // pred_region
          _
        $region60: #{tpu_custom_call.1} parent=11 // pred_fallthru
          _
        // Predicated region
        $region61: #{tpu_custom_call.1} parent=11 // pred_check
          %p442 = pneg %p363
        $region62: #{tpu_custom_call.1} parent=11 // pred_check_branch
          %444 = sbr.rel (%p442) target = $region64
        $region63: #{tpu_custom_call.1} parent=11 // pred_region
          _
        $region64: #{tpu_custom_call.1} parent=11 // pred_fallthru
          _
      $region12: #{tpu_custom_call.1} parent=5 // pred_fallthru
        _
      %p445 = scmp.lt.s32.totalorder %s24, 4
      // Predicated region
      $region65: #{tpu_custom_call.1} parent=5 // pred_check
        %p446 = pneg %p445
      $region66: #{tpu_custom_call.1} parent=5 // pred_check_branch
        %448 = sbr.rel (%p446) target = $region68
      $region67: #{tpu_custom_call.1} parent=5 // pred_region
        // Predicated region
        $region69: #{tpu_custom_call.1} parent=67 // pred_check
          %p449 = pneg %p58
        $region70: #{tpu_custom_call.1} parent=67 // pred_check_branch
          %451 = sbr.rel (%p449) target = $region72
        $region71: #{tpu_custom_call.1} parent=67 // pred_region
          %p452 = scmp.lt.s32.totalorder %s31, 1
          %s453 = scalar_select %p452, %s31, 1
          %p454 = scmp.lt.s32.totalorder %s32, 1
          %s455 = scalar_select %p454, %s32, 1
          %s456 = smul.addr %s453, 2
          %s457 = sadd.s32 %s455, %s456
          %s458 = smul.addr %s457, 8
          %s459 = scalar_lea.vmem %s0, %s458
        $region72: #{tpu_custom_call.1} parent=67 // pred_fallthru
          _
        // Predicated region
        $region73: #{tpu_custom_call.1} parent=67 // pred_check
          %p460 = pneg %p84
        $region74: #{tpu_custom_call.1} parent=67 // pred_check_branch
          %462 = sbr.rel (%p460) target = $region76
        $region75: #{tpu_custom_call.1} parent=67 // pred_region
          %p463 = scmp.lt.s32.totalorder %s31, 1
          %s464 = scalar_select %p463, %s31, 1
          %s465 = smul.addr %s464, 2
          %s466 = smul.addr %s465, 8
          %s467 = scalar_lea.vmem %s1, %s466
        $region76: #{tpu_custom_call.1} parent=67 // pred_fallthru
          _
      $region68: #{tpu_custom_call.1} parent=5 // pred_fallthru
        _
      %p468 = scmp.le.s32.totalorder 1, %s24
      %p469 = scmp.lt.s32.totalorder %s24, 5
      %p470 = pnand %p468, %p469
      %p471 = pneg %p470
      // Predicated region
      $region77: #{tpu_custom_call.1} parent=5 // pred_check
        _
      $region78: #{tpu_custom_call.1} parent=5 // pred_check_branch
        %473 = sbr.rel (%p470) target = $region80
      $region79: #{tpu_custom_call.1} parent=5 // pred_region
        %s474 = ssub.s32 %s24, 1
        %p475 = scmp.lt.s32.totalorder %s33, 1
        %s476 = scalar_select %p475, %s33, 1
        %p477 = scmp.lt.s32.totalorder %s34, 1
        %s478 = scalar_select %p477, %s34, 1
        %s479 = smul.addr %s476, 2
        %s480 = sadd.s32 %s478, %s479
        %s481 = smul.addr %s480, 8
        %s482 = scalar_lea.vmem %s0, %s481
        %p483 = pneg %p64
        %p484 = pneg %p61
        %p485 = scmp.lt.s32.totalorder %s33, 1
        %s486 = scalar_select %p485, %s33, 1
        %s487 = smul.addr %s486, 2
        %s488 = smul.addr %s487, 8
        %s489 = scalar_lea.vmem %s1, %s488
        %p490 = pneg %p90
        %p491 = pneg %p87
        %p492 = pneg %p111
        %p493 = pneg %p108
        %p494 = pneg %p132
        %p495 = pneg %p129
        %p496 = pneg %p153
        %p497 = pneg %p150
        %p498 = pneg %p174
        %p499 = pneg %p171
        %p500 = pneg %p195
        %p501 = pneg %p192
        %p502 = pneg %p216
        %p503 = pneg %p213
        %p504 = pneg %p237
        %p505 = pneg %p234
        %p506 = pneg %p258
        %p507 = pneg %p255
        %p508 = pneg %p279
        %p509 = pneg %p276
        %p510 = pneg %p300
        %p511 = pneg %p297
        %p512 = pneg %p321
        %p513 = pneg %p318
        %p514 = pneg %p342
        %p515 = pneg %p339
        %p516 = pneg %p363
        %p517 = pneg %p360
        %p518 = pneg %p391
        %p519 = pneg %p388
        %s520 = sand.u32 %s378, 1
        %s521 = scalar_lea.sflag [#allocation5], %s520
        %s522 = sand.u32 %s378, 1
        %s523 = smul.addr %s522, 8
        %s524 = scalar_lea.vmem [#allocation4], %s523
        %p525 = scmp.lt.s32.totalorder %s33, 1
        %s526 = scalar_select %p525, %s33, 1
        %p527 = scmp.lt.s32.totalorder %s34, 1
        %s528 = scalar_select %p527, %s34, 1
        %s529 = smul.addr %s526, 2
        %s530 = sadd.s32 %s528, %s529
        %s531 = smul.addr %s530, 8
        %s532 = scalar_lea.vmem %s0, %s531
        %p533 = scmp.lt.s32.totalorder %s33, 1
        %s534 = scalar_select %p533, %s33, 1
        %s535 = smul.addr %s534, 2
        %s536 = smul.addr %s535, 8
        %s537 = scalar_lea.vmem %s1, %s536
        %p539 = scmp.eq.s32.totalorder %s34, 0
        // Predicated region
        $region81: #{tpu_custom_call.1} parent=79 // pred_check
          %p540 = pneg %p539
        $region82: #{tpu_custom_call.1} parent=79 // pred_check_branch
          %542 = sbr.rel (%p540) target = $region84
        $region83: #{tpu_custom_call.1} parent=79 // pred_region
          %v543 = vld [vmem:[%s537] sm:$0xff]
          %v544 = vld [vmem:[%s537 + $0x8] sm:$0xff]
          %v545 = vld [vmem:[%s2] sm:$0x1]
          %v546 = vld [vmem:[%s3] sm:$0x1]
          %vm547 = vcmask 261120
          %v548 = vsel %vm547, %v543, 0.0
          %549 = vadd.xlane.f32.xlu0 %v548
          %v550 = vpop.xlane.xlu0 %549
          %v551 = vsel %vm547, %v544, 0.0
          %552 = vadd.xlane.f32.xlu0 %v551
          %v553 = vpop.xlane.xlu0 %552
          %v554 = vrcp.pop 32.0
          %v555 = vmul.f32 %v550, %v554
          %v556 = vmul.f32 %v553, %v554
          %v557 = vsub.f32 %v543, %v555
          %v558 = vsub.f32 %v544, %v556
          %v559 = vmul.f32 %v557, %v557
          %v560 = vmul.f32 %v558, %v558
          %v561 = vsel %vm547, %v559, 0.0
          %562 = vadd.xlane.f32.xlu0 %v561
          %v563 = vpop.xlane.xlu0 %562
          %v564 = vsel %vm547, %v560, 0.0
          %565 = vadd.xlane.f32.xlu0 %v564
          %v566 = vpop.xlane.xlu0 %565
          %v567 = vmul.f32 %v563, %v554
          %v568 = vmul.f32 %v566, %v554
          %v569 = vadd.f32 %v567, 1e-05
          %v570 = vadd.f32 %v568, 1e-05
          %v571 = vrsqrt.pop %v569
          %v572 = vrsqrt.pop %v570
          %v573 = vmul.f32 %v557, %v571
          %v574 = vmul.f32 %v558, %v572
          %v576 = vlaneseq
          %v577 = vshrl.u32 %v576, 7
          %v578 = vsub.s32 0, %v577
          %v579 = vrot.slane %v545, %v578
          %v581 = vmul.f32 %v573, %v579
          %v582 = vmul.f32 %v574, %v579
          %v584 = vlaneseq
          %v585 = vshrl.u32 %v584, 7
          %v586 = vsub.s32 0, %v585
          %v587 = vrot.slane %v546, %v586
          %v589 = vadd.f32 %v581, %v587
          %v590 = vadd.f32 %v582, %v587
          %v591 = vpack.c.bf16 %v590, %v589
          %v592 = vld [vmem:[%s5] sm:$0xf]
          %v593 = vld [vmem:[%s5 + $0x4] sm:$0xf]
          %v594 = vld [vmem:[%s5 + $0x8] sm:$0xf]
          %v595 = vld [vmem:[%s5 + $0xc] sm:$0xf]
          %v600 = vunpack.c.l.b16 %v592
          %v601 = vunpack.c.l.b16 %v593
          %v602 = vunpack.c.l.b16 %v594
          %v603 = vunpack.c.l.b16 %v595
          %v604 = vpack.c.b16 %v601, %v600
          %v605 = vpack.c.b16 %v603, %v602
          %v609 = vsel %vm547, %v591, 0
          %611 = vmatprep.subr.bf16.mxu0 0
          %612 = vmatpush1.bf16.msra.mxu0 %v604
          %613 = vmatprep.subr.bf16.mxu0 0
          %614 = vmatpush1.bf16.msra.mxu0 %v605
          %615 = vmatprep.subr.bf16.mxu0 0
          %616 = vmatpush1.bf16.msra.mxu0 0
          %617 = vmatprep.subr.bf16.mxu0 0
          %618 = vmatpush1.bf16.msra.mxu0 0
          %619 = vmatprep.subr.bf16.mxu0 0
          %620 = vmatpush1.bf16.msra.mxu0 0
          %621 = vmatprep.subr.bf16.mxu0 0
          %622 = vmatpush1.bf16.msra.mxu0 0
          %623 = vmatprep.subr.bf16.mxu0 0
          %624 = vmatpush1.bf16.msra.mxu0 0
          %625 = vmatprep.subr.bf16.mxu0 0
          %626 = vmatpush1.bf16.msra.mxu0 0
          %627 = vmatprep.subr.bf16.mxu0 0
          %628 = vmatpush1.bf16.msra.mxu0 0
          %629 = vmatprep.subr.bf16.mxu0 0
          %630 = vmatpush1.bf16.msra.mxu0 0
          %631 = vmatprep.subr.bf16.mxu0 0
          %632 = vmatpush1.bf16.msra.mxu0 0
          %633 = vmatprep.subr.bf16.mxu0 0
          %634 = vmatpush1.bf16.msra.mxu0 0
          %635 = vmatprep.subr.bf16.mxu0 0
          %636 = vmatpush1.bf16.msra.mxu0 0
          %637 = vmatprep.subr.bf16.mxu0 0
          %638 = vmatpush1.bf16.msra.mxu0 0
          %639 = vmatprep.subr.bf16.mxu0 0
          %640 = vmatpush1.bf16.msra.mxu0 0
          %641 = vmatprep.subr.bf16.mxu0 0
          %642 = vmatpush1.bf16.msra.mxu0 0
          %643 = vmatprep.mubr.bf16.mxu0 0
          %644 = vmatmul.mubr.bf16.gmra.mrb[0].mxu0 %v609
          %v645 = vpop.f32.mrb[0].mxu0
          %v646 = vadd.f32 0.0, %v645
          %v647 = vpop.f32.mrb[0].mxu0
          %v648 = vpop.f32.mrb[0].mxu0
          %v649 = vadd.f32 0.0, %v648
          %v650 = vpop.f32.mrb[0].mxu0
          %651 = vdwg.mxu0
          %v652 = vpack.c.bf16 %v649, %v646
          %vm653 = vcmask 64512
          %654 = vst.msk [vmem:[#allocation2] sm:$0xff] %vm653, %v652
          %v655 = vld [vmem:[%s6] sm:$0xf]
          %v656 = vld [vmem:[%s6 + $0x4] sm:$0xf]
          %v657 = vld [vmem:[%s6 + $0x8] sm:$0xf]
          %v658 = vld [vmem:[%s6 + $0xc] sm:$0xf]
          %v663 = vunpack.c.l.b16 %v655
          %v664 = vunpack.c.l.b16 %v656
          %v665 = vunpack.c.l.b16 %v657
          %v666 = vunpack.c.l.b16 %v658
          %v667 = vpack.c.b16 %v664, %v663
          %v668 = vpack.c.b16 %v666, %v665
          %671 = vmatprep.subr.bf16.mxu0 0
          %672 = vmatpush1.bf16.msra.mxu0 %v667
          %673 = vmatprep.subr.bf16.mxu0 0
          %674 = vmatpush1.bf16.msra.mxu0 %v668
          %675 = vmatprep.subr.bf16.mxu0 0
          %676 = vmatpush1.bf16.msra.mxu0 0
          %677 = vmatprep.subr.bf16.mxu0 0
          %678 = vmatpush1.bf16.msra.mxu0 0
          %679 = vmatprep.subr.bf16.mxu0 0
          %680 = vmatpush1.bf16.msra.mxu0 0
          %681 = vmatprep.subr.bf16.mxu0 0
          %682 = vmatpush1.bf16.msra.mxu0 0
          %683 = vmatprep.subr.bf16.mxu0 0
          %684 = vmatpush1.bf16.msra.mxu0 0
          %685 = vmatprep.subr.bf16.mxu0 0
          %686 = vmatpush1.bf16.msra.mxu0 0
          %687 = vmatprep.subr.bf16.mxu0 0
          %688 = vmatpush1.bf16.msra.mxu0 0
          %689 = vmatprep.subr.bf16.mxu0 0
          %690 = vmatpush1.bf16.msra.mxu0 0
          %691 = vmatprep.subr.bf16.mxu0 0
          %692 = vmatpush1.bf16.msra.mxu0 0
          %693 = vmatprep.subr.bf16.mxu0 0
          %694 = vmatpush1.bf16.msra.mxu0 0
          %695 = vmatprep.subr.bf16.mxu0 0
          %696 = vmatpush1.bf16.msra.mxu0 0
          %697 = vmatprep.subr.bf16.mxu0 0
          %698 = vmatpush1.bf16.msra.mxu0 0
          %699 = vmatprep.subr.bf16.mxu0 0
          %700 = vmatpush1.bf16.msra.mxu0 0
          %701 = vmatprep.subr.bf16.mxu0 0
          %702 = vmatpush1.bf16.msra.mxu0 0
          %703 = vmatprep.mubr.bf16.mxu0 0
          %704 = vmatmul.mubr.bf16.gmra.mrb[0].mxu0 %v609
          %v705 = vpop.f32.mrb[0].mxu0
          %v706 = vadd.f32 0.0, %v705
          %v707 = vpop.f32.mrb[0].mxu0
          %v708 = vpop.f32.mrb[0].mxu0
          %v709 = vadd.f32 0.0, %v708
          %v710 = vpop.f32.mrb[0].mxu0
          %711 = vdwg.mxu0
          %v712 = vpack.c.bf16 %v709, %v706
          %713 = vst.msk [vmem:[#allocation3] sm:$0xff] %vm653, %v712
          %s714 = scalar_lea.vmem %s5, 16
          %v715 = vld [vmem:[%s714] sm:$0xf]
          %v716 = vld [vmem:[%s714 + $0x4] sm:$0xf]
          %v717 = vld [vmem:[%s714 + $0x8] sm:$0xf]
          %v718 = vld [vmem:[%s714 + $0xc] sm:$0xf]
          %v723 = vunpack.c.l.b16 %v715
          %v724 = vunpack.c.l.b16 %v716
          %v725 = vunpack.c.l.b16 %v717
          %v726 = vunpack.c.l.b16 %v718
          %v727 = vpack.c.b16 %v724, %v723
          %v728 = vpack.c.b16 %v726, %v725
          %731 = vmatprep.subr.bf16.mxu0 0
          %732 = vmatpush1.bf16.msra.mxu0 %v727
          %733 = vmatprep.subr.bf16.mxu0 0
          %734 = vmatpush1.bf16.msra.mxu0 %v728
          %735 = vmatprep.subr.bf16.mxu0 0
          %736 = vmatpush1.bf16.msra.mxu0 0
          %737 = vmatprep.subr.bf16.mxu0 0
          %738 = vmatpush1.bf16.msra.mxu0 0
          %739 = vmatprep.subr.bf16.mxu0 0
          %740 = vmatpush1.bf16.msra.mxu0 0
          %741 = vmatprep.subr.bf16.mxu0 0
          %742 = vmatpush1.bf16.msra.mxu0 0
          %743 = vmatprep.subr.bf16.mxu0 0
          %744 = vmatpush1.bf16.msra.mxu0 0
          %745 = vmatprep.subr.bf16.mxu0 0
          %746 = vmatpush1.bf16.msra.mxu0 0
          %747 = vmatprep.subr.bf16.mxu0 0
          %748 = vmatpush1.bf16.msra.mxu0 0
          %749 = vmatprep.subr.bf16.mxu0 0
          %750 = vmatpush1.bf16.msra.mxu0 0
          %751 = vmatprep.subr.bf16.mxu0 0
          %752 = vmatpush1.bf16.msra.mxu0 0
          %753 = vmatprep.subr.bf16.mxu0 0
          %754 = vmatpush1.bf16.msra.mxu0 0
          %755 = vmatprep.subr.bf16.mxu0 0
          %756 = vmatpush1.bf16.msra.mxu0 0
          %757 = vmatprep.subr.bf16.mxu0 0
          %758 = vmatpush1.bf16.msra.mxu0 0
          %759 = vmatprep.subr.bf16.mxu0 0
          %760 = vmatpush1.bf16.msra.mxu0 0
          %761 = vmatprep.subr.bf16.mxu0 0
          %762 = vmatpush1.bf16.msra.mxu0 0
          %763 = vmatprep.mubr.bf16.mxu0 0
          %764 = vmatmul.mubr.bf16.gmra.mrb[0].mxu0 %v609
          %v765 = vpop.f32.mrb[0].mxu0
          %v766 = vadd.f32 0.0, %v765
          %v767 = vpop.f32.mrb[0].mxu0
          %v768 = vpop.f32.mrb[0].mxu0
          %v769 = vadd.f32 0.0, %v768
          %v770 = vpop.f32.mrb[0].mxu0
          %771 = vdwg.mxu0
          %v772 = vpack.c.bf16 %v769, %v766
          %s773 = scalar_lea.vmem [#allocation2], 8
          %774 = vst.msk [vmem:[%s773] sm:$0xff] %vm653, %v772
          %s775 = scalar_lea.vmem %s6, 16
          %v776 = vld [vmem:[%s775] sm:$0xf]
          %v777 = vld [vmem:[%s775 + $0x4] sm:$0xf]
          %v778 = vld [vmem:[%s775 + $0x8] sm:$0xf]
          %v779 = vld [vmem:[%s775 + $0xc] sm:$0xf]
          %v784 = vunpack.c.l.b16 %v776
          %v785 = vunpack.c.l.b16 %v777
          %v786 = vunpack.c.l.b16 %v778
          %v787 = vunpack.c.l.b16 %v779
          %v788 = vpack.c.b16 %v785, %v784
          %v789 = vpack.c.b16 %v787, %v786
          %792 = vmatprep.subr.bf16.mxu0 0
          %793 = vmatpush1.bf16.msra.mxu0 %v788
          %794 = vmatprep.subr.bf16.mxu0 0
          %795 = vmatpush1.bf16.msra.mxu0 %v789
          %796 = vmatprep.subr.bf16.mxu0 0
          %797 = vmatpush1.bf16.msra.mxu0 0
          %798 = vmatprep.subr.bf16.mxu0 0
          %799 = vmatpush1.bf16.msra.mxu0 0
          %800 = vmatprep.subr.bf16.mxu0 0
          %801 = vmatpush1.bf16.msra.mxu0 0
          %802 = vmatprep.subr.bf16.mxu0 0
          %803 = vmatpush1.bf16.msra.mxu0 0
          %804 = vmatprep.subr.bf16.mxu0 0
          %805 = vmatpush1.bf16.msra.mxu0 0
          %806 = vmatprep.subr.bf16.mxu0 0
          %807 = vmatpush1.bf16.msra.mxu0 0
          %808 = vmatprep.subr.bf16.mxu0 0
          %809 = vmatpush1.bf16.msra.mxu0 0
          %810 = vmatprep.subr.bf16.mxu0 0
          %811 = vmatpush1.bf16.msra.mxu0 0
          %812 = vmatprep.subr.bf16.mxu0 0
          %813 = vmatpush1.bf16.msra.mxu0 0
          %814 = vmatprep.subr.bf16.mxu0 0
          %815 = vmatpush1.bf16.msra.mxu0 0
          %816 = vmatprep.subr.bf16.mxu0 0
          %817 = vmatpush1.bf16.msra.mxu0 0
          %818 = vmatprep.subr.bf16.mxu0 0
          %819 = vmatpush1.bf16.msra.mxu0 0
          %820 = vmatprep.subr.bf16.mxu0 0
          %821 = vmatpush1.bf16.msra.mxu0 0
          %822 = vmatprep.subr.bf16.mxu0 0
          %823 = vmatpush1.bf16.msra.mxu0 0
          %824 = vmatprep.mubr.bf16.mxu0 0
          %825 = vmatmul.mubr.bf16.gmra.mrb[0].mxu0 %v609
          %v826 = vpop.f32.mrb[0].mxu0
          %v827 = vadd.f32 0.0, %v826
          %v828 = vpop.f32.mrb[0].mxu0
          %v829 = vpop.f32.mrb[0].mxu0
          %v830 = vadd.f32 0.0, %v829
          %v831 = vpop.f32.mrb[0].mxu0
          %832 = vdwg.mxu0
          %v833 = vpack.c.bf16 %v830, %v827
          %s834 = scalar_lea.vmem [#allocation3], 8
          %835 = vst.msk [vmem:[%s834] sm:$0xff] %vm653, %v833
          %s836 = scalar_lea.vmem %s5, 32
          %v837 = vld [vmem:[%s836] sm:$0xf]
          %v838 = vld [vmem:[%s836 + $0x4] sm:$0xf]
          %v839 = vld [vmem:[%s836 + $0x8] sm:$0xf]
          %v840 = vld [vmem:[%s836 + $0xc] sm:$0xf]
          %v845 = vunpack.c.l.b16 %v837
          %v846 = vunpack.c.l.b16 %v838
          %v847 = vunpack.c.l.b16 %v839
          %v848 = vunpack.c.l.b16 %v840
          %v849 = vpack.c.b16 %v846, %v845
          %v850 = vpack.c.b16 %v848, %v847
          %853 = vmatprep.subr.bf16.mxu0 0
          %854 = vmatpush1.bf16.msra.mxu0 %v849
          %855 = vmatprep.subr.bf16.mxu0 0
          %856 = vmatpush1.bf16.msra.mxu0 %v850
          %857 = vmatprep.subr.bf16.mxu0 0
          %858 = vmatpush1.bf16.msra.mxu0 0
          %859 = vmatprep.subr.bf16.mxu0 0
          %860 = vmatpush1.bf16.msra.mxu0 0
          %861 = vmatprep.subr.bf16.mxu0 0
          %862 = vmatpush1.bf16.msra.mxu0 0
          %863 = vmatprep.subr.bf16.mxu0 0
          %864 = vmatpush1.bf16.msra.mxu0 0
          %865 = vmatprep.subr.bf16.mxu0 0
          %866 = vmatpush1.bf16.msra.mxu0 0
          %867 = vmatprep.subr.bf16.mxu0 0
          %868 = vmatpush1.bf16.msra.mxu0 0
          %869 = vmatprep.subr.bf16.mxu0 0
          %870 = vmatpush1.bf16.msra.mxu0 0
          %871 = vmatprep.subr.bf16.mxu0 0
          %872 = vmatpush1.bf16.msra.mxu0 0
          %873 = vmatprep.subr.bf16.mxu0 0
          %874 = vmatpush1.bf16.msra.mxu0 0
          %875 = vmatprep.subr.bf16.mxu0 0
          %876 = vmatpush1.bf16.msra.mxu0 0
          %877 = vmatprep.subr.bf16.mxu0 0
          %878 = vmatpush1.bf16.msra.mxu0 0
          %879 = vmatprep.subr.bf16.mxu0 0
          %880 = vmatpush1.bf16.msra.mxu0 0
          %881 = vmatprep.subr.bf16.mxu0 0
          %882 = vmatpush1.bf16.msra.mxu0 0
          %883 = vmatprep.subr.bf16.mxu0 0
          %884 = vmatpush1.bf16.msra.mxu0 0
          %885 = vmatprep.mubr.bf16.mxu0 0
          %886 = vmatmul.mubr.bf16.gmra.mrb[0].mxu0 %v609
          %v887 = vpop.f32.mrb[0].mxu0
          %v888 = vadd.f32 0.0, %v887
          %v889 = vpop.f32.mrb[0].mxu0
          %v890 = vpop.f32.mrb[0].mxu0
          %v891 = vadd.f32 0.0, %v890
          %v892 = vpop.f32.mrb[0].mxu0
          %893 = vdwg.mxu0
          %v894 = vpack.c.bf16 %v891, %v888
          %s895 = scalar_lea.vmem [#allocation2], 16
          %896 = vst.msk [vmem:[%s895] sm:$0xff] %vm653, %v894
          %s897 = scalar_lea.vmem %s6, 32
          %v898 = vld [vmem:[%s897] sm:$0xf]
          %v899 = vld [vmem:[%s897 + $0x4] sm:$0xf]
          %v900 = vld [vmem:[%s897 + $0x8] sm:$0xf]
          %v901 = vld [vmem:[%s897 + $0xc] sm:$0xf]
          %v906 = vunpack.c.l.b16 %v898
          %v907 = vunpack.c.l.b16 %v899
          %v908 = vunpack.c.l.b16 %v900
          %v909 = vunpack.c.l.b16 %v901
          %v910 = vpack.c.b16 %v907, %v906
          %v911 = vpack.c.b16 %v909, %v908
          %914 = vmatprep.subr.bf16.mxu0 0
          %915 = vmatpush1.bf16.msra.mxu0 %v910
          %916 = vmatprep.subr.bf16.mxu0 0
          %917 = vmatpush1.bf16.msra.mxu0 %v911
          %918 = vmatprep.subr.bf16.mxu0 0
          %919 = vmatpush1.bf16.msra.mxu0 0
          %920 = vmatprep.subr.bf16.mxu0 0
          %921 = vmatpush1.bf16.msra.mxu0 0
          %922 = vmatprep.subr.bf16.mxu0 0
          %923 = vmatpush1.bf16.msra.mxu0 0
          %924 = vmatprep.subr.bf16.mxu0 0
          %925 = vmatpush1.bf16.msra.mxu0 0
          %926 = vmatprep.subr.bf16.mxu0 0
          %927 = vmatpush1.bf16.msra.mxu0 0
          %928 = vmatprep.subr.bf16.mxu0 0
          %929 = vmatpush1.bf16.msra.mxu0 0
          %930 = vmatprep.subr.bf16.mxu0 0
          %931 = vmatpush1.bf16.msra.mxu0 0
          %932 = vmatprep.subr.bf16.mxu0 0
          %933 = vmatpush1.bf16.msra.mxu0 0
          %934 = vmatprep.subr.bf16.mxu0 0
          %935 = vmatpush1.bf16.msra.mxu0 0
          %936 = vmatprep.subr.bf16.mxu0 0
          %937 = vmatpush1.bf16.msra.mxu0 0
          %938 = vmatprep.subr.bf16.mxu0 0
          %939 = vmatpush1.bf16.msra.mxu0 0
          %940 = vmatprep.subr.bf16.mxu0 0
          %941 = vmatpush1.bf16.msra.mxu0 0
          %942 = vmatprep.subr.bf16.mxu0 0
          %943 = vmatpush1.bf16.msra.mxu0 0
          %944 = vmatprep.subr.bf16.mxu0 0
          %945 = vmatpush1.bf16.msra.mxu0 0
          %946 = vmatprep.mubr.bf16.mxu0 0
          %947 = vmatmul.mubr.bf16.gmra.mrb[0].mxu0 %v609
          %v948 = vpop.f32.mrb[0].mxu0
          %v949 = vadd.f32 0.0, %v948
          %v950 = vpop.f32.mrb[0].mxu0
          %v951 = vpop.f32.mrb[0].mxu0
          %v952 = vadd.f32 0.0, %v951
          %v953 = vpop.f32.mrb[0].mxu0
          %954 = vdwg.mxu0
          %v955 = vpack.c.bf16 %v952, %v949
          %s956 = scalar_lea.vmem [#allocation3], 16
          %957 = vst.msk [vmem:[%s956] sm:$0xff] %vm653, %v955
          %s958 = scalar_lea.vmem %s5, 48
          %v959 = vld [vmem:[%s958] sm:$0xf]
          %v960 = vld [vmem:[%s958 + $0x4] sm:$0xf]
          %v961 = vld [vmem:[%s958 + $0x8] sm:$0xf]
          %v962 = vld [vmem:[%s958 + $0xc] sm:$0xf]
          %v967 = vunpack.c.l.b16 %v959
          %v968 = vunpack.c.l.b16 %v960
          %v969 = vunpack.c.l.b16 %v961
          %v970 = vunpack.c.l.b16 %v962
          %v971 = vpack.c.b16 %v968, %v967
          %v972 = vpack.c.b16 %v970, %v969
          %975 = vmatprep.subr.bf16.mxu0 0
          %976 = vmatpush1.bf16.msra.mxu0 %v971
          %977 = vmatprep.subr.bf16.mxu0 0
          %978 = vmatpush1.bf16.msra.mxu0 %v972
          %979 = vmatprep.subr.bf16.mxu0 0
          %980 = vmatpush1.bf16.msra.mxu0 0
          %981 = vmatprep.subr.bf16.mxu0 0
          %982 = vmatpush1.bf16.msra.mxu0 0
          %983 = vmatprep.subr.bf16.mxu0 0
          %984 = vmatpush1.bf16.msra.mxu0 0
          %985 = vmatprep.subr.bf16.mxu0 0
          %986 = vmatpush1.bf16.msra.mxu0 0
          %987 = vmatprep.subr.bf16.mxu0 0
          %988 = vmatpush1.bf16.msra.mxu0 0
          %989 = vmatprep.subr.bf16.mxu0 0
          %990 = vmatpush1.bf16.msra.mxu0 0
          %991 = vmatprep.subr.bf16.mxu0 0
          %992 = vmatpush1.bf16.msra.mxu0 0
          %993 = vmatprep.subr.bf16.mxu0 0
          %994 = vmatpush1.bf16.msra.mxu0 0
          %995 = vmatprep.subr.bf16.mxu0 0
          %996 = vmatpush1.bf16.msra.mxu0 0
          %997 = vmatprep.subr.bf16.mxu0 0
          %998 = vmatpush1.bf16.msra.mxu0 0
          %999 = vmatprep.subr.bf16.mxu0 0
          %1000 = vmatpush1.bf16.msra.mxu0 0
          %1001 = vmatprep.subr.bf16.mxu0 0
          %1002 = vmatpush1.bf16.msra.mxu0 0
          %1003 = vmatprep.subr.bf16.mxu0 0
          %1004 = vmatpush1.bf16.msra.mxu0 0
          %1005 = vmatprep.subr.bf16.mxu0 0
          %1006 = vmatpush1.bf16.msra.mxu0 0
          %1007 = vmatprep.mubr.bf16.mxu0 0
          %1008 = vmatmul.mubr.bf16.gmra.mrb[0].mxu0 %v609
          %v1009 = vpop.f32.mrb[0].mxu0
          %v1010 = vadd.f32 0.0, %v1009
          %v1011 = vpop.f32.mrb[0].mxu0
          %v1012 = vpop.f32.mrb[0].mxu0
          %v1013 = vadd.f32 0.0, %v1012
          %v1014 = vpop.f32.mrb[0].mxu0
          %1015 = vdwg.mxu0
          %v1016 = vpack.c.bf16 %v1013, %v1010
          %s1017 = scalar_lea.vmem [#allocation2], 24
          %1018 = vst.msk [vmem:[%s1017] sm:$0xff] %vm653, %v1016
          %s1019 = scalar_lea.vmem %s6, 48
          %v1020 = vld [vmem:[%s1019] sm:$0xf]
          %v1021 = vld [vmem:[%s1019 + $0x4] sm:$0xf]
          %v1022 = vld [vmem:[%s1019 + $0x8] sm:$0xf]
          %v1023 = vld [vmem:[%s1019 + $0xc] sm:$0xf]
          %v1028 = vunpack.c.l.b16 %v1020
          %v1029 = vunpack.c.l.b16 %v1021
          %v1030 = vunpack.c.l.b16 %v1022
          %v1031 = vunpack.c.l.b16 %v1023
          %v1032 = vpack.c.b16 %v1029, %v1028
          %v1033 = vpack.c.b16 %v1031, %v1030
          %1036 = vmatprep.subr.bf16.mxu0 0
          %1037 = vmatpush1.bf16.msra.mxu0 %v1032
          %1038 = vmatprep.subr.bf16.mxu0 0
          %1039 = vmatpush1.bf16.msra.mxu0 %v1033
          %1040 = vmatprep.subr.bf16.mxu0 0
          %1041 = vmatpush1.bf16.msra.mxu0 0
          %1042 = vmatprep.subr.bf16.mxu0 0
          %1043 = vmatpush1.bf16.msra.mxu0 0
          %1044 = vmatprep.subr.bf16.mxu0 0
          %1045 = vmatpush1.bf16.msra.mxu0 0
          %1046 = vmatprep.subr.bf16.mxu0 0
          %1047 = vmatpush1.bf16.msra.mxu0 0
          %1048 = vmatprep.subr.bf16.mxu0 0
          %1049 = vmatpush1.bf16.msra.mxu0 0
          %1050 = vmatprep.subr.bf16.mxu0 0
          %1051 = vmatpush1.bf16.msra.mxu0 0
          %1052 = vmatprep.subr.bf16.mxu0 0
          %1053 = vmatpush1.bf16.msra.mxu0 0
          %1054 = vmatprep.subr.bf16.mxu0 0
          %1055 = vmatpush1.bf16.msra.mxu0 0
          %1056 = vmatprep.subr.bf16.mxu0 0
          %1057 = vmatpush1.bf16.msra.mxu0 0
          %1058 = vmatprep.subr.bf16.mxu0 0
          %1059 = vmatpush1.bf16.msra.mxu0 0
          %1060 = vmatprep.subr.bf16.mxu0 0
          %1061 = vmatpush1.bf16.msra.mxu0 0
          %1062 = vmatprep.subr.bf16.mxu0 0
          %1063 = vmatpush1.bf16.msra.mxu0 0
          %1064 = vmatprep.subr.bf16.mxu0 0
          %1065 = vmatpush1.bf16.msra.mxu0 0
          %1066 = vmatprep.subr.bf16.mxu0 0
          %1067 = vmatpush1.bf16.msra.mxu0 0
          %1068 = vmatprep.mubr.bf16.mxu0 0
          %1069 = vmatmul.mubr.bf16.gmra.mrb[0].mxu0 %v609
          %v1070 = vpop.f32.mrb[0].mxu0
          %v1071 = vadd.f32 0.0, %v1070
          %v1072 = vpop.f32.mrb[0].mxu0
          %v1073 = vpop.f32.mrb[0].mxu0
          %v1074 = vadd.f32 0.0, %v1073
          %v1075 = vpop.f32.mrb[0].mxu0
          %1076 = vdwg.mxu0
          %v1077 = vpack.c.bf16 %v1074, %v1071
          %s1078 = scalar_lea.vmem [#allocation3], 24
          %1079 = vst.msk [vmem:[%s1078] sm:$0xff] %vm653, %v1077
        $region84: #{tpu_custom_call.1} parent=79 // pred_fallthru
          _
        %v1080 = vld [vmem:[%s532] sm:$0xff]
        %v1081 = vld [vmem:[%s2] sm:$0x1]
        %v1082 = vld [vmem:[%s3] sm:$0x1]
        %vm1083 = vcmask 261120
        %v1084 = vsel %vm1083, %v1080, 0.0
        %1085 = vadd.xlane.f32.xlu0 %v1084
        %v1086 = vpop.xlane.xlu0 %1085
        %v1087 = vrcp.pop 32.0
        %v1088 = vmul.f32 %v1086, %v1087
        %v1089 = vsub.f32 %v1080, %v1088
        %v1090 = vmul.f32 %v1089, %v1089
        %v1091 = vsel %vm1083, %v1090, 0.0
        %1092 = vadd.xlane.f32.xlu0 %v1091
        %v1093 = vpop.xlane.xlu0 %1092
        %v1094 = vmul.f32 %v1093, %v1087
        %v1095 = vadd.f32 %v1094, 1e-05
        %v1096 = vrsqrt.pop %v1095
        %v1097 = vmul.f32 %v1089, %v1096
        %v1099 = vlaneseq
        %v1100 = vshrl.u32 %v1099, 7
        %v1101 = vsub.s32 0, %v1100
        %v1102 = vrot.slane %v1081, %v1101
        %v1104 = vmul.f32 %v1097, %v1102
        %v1106 = vlaneseq
        %v1107 = vshrl.u32 %v1106, 7
        %v1108 = vsub.s32 0, %v1107
        %v1109 = vrot.slane %v1082, %v1108
        %v1111 = vadd.f32 %v1104, %v1109
        %v1112 = vpack.c.bf16 %v1111, %v1111
        %v1113 = vld [vmem:[%s4] sm:$0xf]
        %v1114 = vld [vmem:[%s4 + $0x4] sm:$0xf]
        %v1115 = vld [vmem:[%s4 + $0x8] sm:$0xf]
        %v1116 = vld [vmem:[%s4 + $0xc] sm:$0xf]
        %v1121 = vunpack.c.l.b16 %v1113
        %v1122 = vunpack.c.l.b16 %v1114
        %v1123 = vunpack.c.l.b16 %v1115
        %v1124 = vunpack.c.l.b16 %v1116
        %v1125 = vpack.c.b16 %v1122, %v1121
        %v1126 = vpack.c.b16 %v1124, %v1123
        %v1130 = vsel %vm1083, %v1112, 0
        %1132 = vmatprep.subr.bf16.mxu0 0
        %1133 = vmatpush1.bf16.msra.mxu0 %v1125
        %1134 = vmatprep.subr.bf16.mxu0 0
        %1135 = vmatpush1.bf16.msra.mxu0 %v1126
        %1136 = vmatprep.subr.bf16.mxu0 0
        %1137 = vmatpush1.bf16.msra.mxu0 0
        %1138 = vmatprep.subr.bf16.mxu0 0
        %1139 = vmatpush1.bf16.msra.mxu0 0
        %1140 = vmatprep.subr.bf16.mxu0 0
        %1141 = vmatpush1.bf16.msra.mxu0 0
        %1142 = vmatprep.subr.bf16.mxu0 0
        %1143 = vmatpush1.bf16.msra.mxu0 0
        %1144 = vmatprep.subr.bf16.mxu0 0
        %1145 = vmatpush1.bf16.msra.mxu0 0
        %1146 = vmatprep.subr.bf16.mxu0 0
        %1147 = vmatpush1.bf16.msra.mxu0 0
        %1148 = vmatprep.subr.bf16.mxu0 0
        %1149 = vmatpush1.bf16.msra.mxu0 0
        %1150 = vmatprep.subr.bf16.mxu0 0
        %1151 = vmatpush1.bf16.msra.mxu0 0
        %1152 = vmatprep.subr.bf16.mxu0 0
        %1153 = vmatpush1.bf16.msra.mxu0 0
        %1154 = vmatprep.subr.bf16.mxu0 0
        %1155 = vmatpush1.bf16.msra.mxu0 0
        %1156 = vmatprep.subr.bf16.mxu0 0
        %1157 = vmatpush1.bf16.msra.mxu0 0
        %1158 = vmatprep.subr.bf16.mxu0 0
        %1159 = vmatpush1.bf16.msra.mxu0 0
        %1160 = vmatprep.subr.bf16.mxu0 0
        %1161 = vmatpush1.bf16.msra.mxu0 0
        %1162 = vmatprep.subr.bf16.mxu0 0
        %1163 = vmatpush1.bf16.msra.mxu0 0
        %1164 = vmatprep.mubr.bf16.mxu0 0
        %1165 = vmatmul.mubr.bf16.gmra.mrb[0].mxu0 %v1130
        %v1166 = vpop.f32.mrb[0].mxu0
        %v1167 = vadd.f32 0.0, %v1166
        %v1168 = vpop.f32.mrb[0].mxu0
        %v1169 = vpop.f32.mrb[0].mxu0
        %v1170 = vpop.f32.mrb[0].mxu0
        %1171 = vdwg.mxu0
        %v1172 = vpack.c.bf16 %v1167, %v1167
        %v1173 = vld [vmem:[#allocation2] sm:$0xff]
        %vm1174 = vcmask 64512
        %v1176 = vsel %vm1174, %v1172, 0
        %v1179 = vsel %vm1174, %v1173, 0
        %1181 = vmatprep.subr.bf16.mxu0 0
        %1182 = vmatpush1.bf16.xpose.msra.mxu0 %v1179
        %1183 = vmatprep.subr.bf16.mxu0 0
        %1184 = vmatpush1.bf16.xpose.msra.mxu0 0
        %1185 = vmatprep.subr.bf16.mxu0 0
        %1186 = vmatpush1.bf16.xpose.msra.mxu0 0
        %1187 = vmatprep.subr.bf16.mxu0 0
        %1188 = vmatpush1.bf16.xpose.msra.mxu0 0
        %1189 = vmatprep.subr.bf16.mxu0 0
        %1190 = vmatpush1.bf16.xpose.msra.mxu0 0
        %1191 = vmatprep.subr.bf16.mxu0 0
        %1192 = vmatpush1.bf16.xpose.msra.mxu0 0
        %1193 = vmatprep.subr.bf16.mxu0 0
        %1194 = vmatpush1.bf16.xpose.msra.mxu0 0
        %1195 = vmatprep.subr.bf16.mxu0 0
        %1196 = vmatpush1.bf16.xpose.msra.mxu0 0
        %1197 = vmatprep.subr.bf16.mxu0 0
        %1198 = vmatpush1.bf16.xpose.msra.mxu0 0
        %1199 = vmatprep.subr.bf16.mxu0 0
        %1200 = vmatpush1.bf16.xpose.msra.mxu0 0
        %1201 = vmatprep.subr.bf16.mxu0 0
        %1202 = vmatpush1.bf16.xpose.msra.mxu0 0
        %1203 = vmatprep.subr.bf16.mxu0 0
        %1204 = vmatpush1.bf16.xpose.msra.mxu0 0
        %1205 = vmatprep.subr.bf16.mxu0 0
        %1206 = vmatpush1.bf16.xpose.msra.mxu0 0
        %1207 = vmatprep.subr.bf16.mxu0 0
        %1208 = vmatpush1.bf16.xpose.msra.mxu0 0
        %1209 = vmatprep.subr.bf16.mxu0 0
        %1210 = vmatpush1.bf16.xpose.msra.mxu0 0
        %1211 = vmatprep.subr.bf16.mxu0 0
        %1212 = vmatpush1.bf16.xpose.msra.mxu0 0
        %1213 = vmatprep.mubr.bf16.mxu0 0
        %1214 = vmatmul.mubr.bf16.gmra.mrb[0].mxu0 %v1176
        %v1215 = vpop.f32.mrb[0].mxu0
        %v1216 = vadd.f32 0.0, %v1215
        %v1217 = vpop.f32.mrb[0].mxu0
        %v1218 = vpop.f32.mrb[0].mxu0
        %v1219 = vpop.f32.mrb[0].mxu0
        %1220 = vdwg.mxu0
        %vm1221 = vcmask 130048
        %v1222 = vsel %vm1221, %v1216, -inf
        %1223 = vmax.xlane.f32.xlu0 %v1222
        %v1224 = vpop.xlane.xlu0 %1223
        %v1225 = vsub.f32 %v1216, %v1224
        %v1226 = vmul.f32 %v1225, 1.442695
        %v1227 = vpow.pop %v1226
        %v1228 = vsel %vm1221, %v1227, 0.0
        %1229 = vadd.xlane.f32.xlu0 %v1228
        %v1230 = vpop.xlane.xlu0 %1229
        %v1231 = vrcp.pop %v1230
        %v1232 = vmul.f32 %v1227, %v1231
        %v1233 = vpack.c.bf16 %v1232, %v1232
        %v1234 = vld [vmem:[#allocation3] sm:$0xff]
        %v1236 = vsel %vm1221, %v1233, 0
        %1238 = vmatprep.subr.bf16.mxu0 0
        %1239 = vmatpush1.bf16.msra.mxu0 %v1234
        %1240 = vmatprep.subr.bf16.mxu0 0
        %1241 = vmatpush1.bf16.msra.mxu0 0
        %1242 = vmatprep.subr.bf16.mxu0 0
        %1243 = vmatpush1.bf16.msra.mxu0 0
        %1244 = vmatprep.subr.bf16.mxu0 0
        %1245 = vmatpush1.bf16.msra.mxu0 0
        %1246 = vmatprep.subr.bf16.mxu0 0
        %1247 = vmatpush1.bf16.msra.mxu0 0
        %1248 = vmatprep.subr.bf16.mxu0 0
        %1249 = vmatpush1.bf16.msra.mxu0 0
        %1250 = vmatprep.subr.bf16.mxu0 0
        %1251 = vmatpush1.bf16.msra.mxu0 0
        %1252 = vmatprep.subr.bf16.mxu0 0
        %1253 = vmatpush1.bf16.msra.mxu0 0
        %1254 = vmatprep.subr.bf16.mxu0 0
        %1255 = vmatpush1.bf16.msra.mxu0 0
        %1256 = vmatprep.subr.bf16.mxu0 0
        %1257 = vmatpush1.bf16.msra.mxu0 0
        %1258 = vmatprep.subr.bf16.mxu0 0
        %1259 = vmatpush1.bf16.msra.mxu0 0
        %1260 = vmatprep.subr.bf16.mxu0 0
        %1261 = vmatpush1.bf16.msra.mxu0 0
        %1262 = vmatprep.subr.bf16.mxu0 0
        %1263 = vmatpush1.bf16.msra.mxu0 0
        %1264 = vmatprep.subr.bf16.mxu0 0
        %1265 = vmatpush1.bf16.msra.mxu0 0
        %1266 = vmatprep.subr.bf16.mxu0 0
        %1267 = vmatpush1.bf16.msra.mxu0 0
        %1268 = vmatprep.subr.bf16.mxu0 0
        %1269 = vmatpush1.bf16.msra.mxu0 0
        %1270 = vmatprep.mubr.bf16.mxu0 0
        %1271 = vmatmul.mubr.bf16.gmra.mrb[0].mxu0 %v1236
        %v1272 = vpop.f32.mrb[0].mxu0
        %v1273 = vadd.f32 0.0, %v1272
        %v1274 = vpop.f32.mrb[0].mxu0
        %v1275 = vpop.f32.mrb[0].mxu0
        %v1276 = vpop.f32.mrb[0].mxu0
        %1277 = vdwg.mxu0
        %v1278 = vpack.c.bf16 %v1273, %v1273
        %v1279 = vld [vmem:[%s7] sm:$0xf]
        %s1280 = scalar_lea.vmem %s4, 16
        %v1281 = vld [vmem:[%s1280] sm:$0xf]
        %v1282 = vld [vmem:[%s1280 + $0x4] sm:$0xf]
        %v1283 = vld [vmem:[%s1280 + $0x8] sm:$0xf]
        %v1284 = vld [vmem:[%s1280 + $0xc] sm:$0xf]
        %v1289 = vunpack.c.l.b16 %v1281
        %v1290 = vunpack.c.l.b16 %v1282
        %v1291 = vunpack.c.l.b16 %v1283
        %v1292 = vunpack.c.l.b16 %v1284
        %v1293 = vpack.c.b16 %v1290, %v1289
        %v1294 = vpack.c.b16 %v1292, %v1291
        %1297 = vmatprep.subr.bf16.mxu0 0
        %1298 = vmatpush1.bf16.msra.mxu0 %v1293
        %1299 = vmatprep.subr.bf16.mxu0 0
        %1300 = vmatpush1.bf16.msra.mxu0 %v1294
        %1301 = vmatprep.subr.bf16.mxu0 0
        %1302 = vmatpush1.bf16.msra.mxu0 0
        %1303 = vmatprep.subr.bf16.mxu0 0
        %1304 = vmatpush1.bf16.msra.mxu0 0
        %1305 = vmatprep.subr.bf16.mxu0 0
        %1306 = vmatpush1.bf16.msra.mxu0 0
        %1307 = vmatprep.subr.bf16.mxu0 0
        %1308 = vmatpush1.bf16.msra.mxu0 0
        %1309 = vmatprep.subr.bf16.mxu0 0
        %1310 = vmatpush1.bf16.msra.mxu0 0
        %1311 = vmatprep.subr.bf16.mxu0 0
        %1312 = vmatpush1.bf16.msra.mxu0 0
        %1313 = vmatprep.subr.bf16.mxu0 0
        %1314 = vmatpush1.bf16.msra.mxu0 0
        %1315 = vmatprep.subr.bf16.mxu0 0
        %1316 = vmatpush1.bf16.msra.mxu0 0
        %1317 = vmatprep.subr.bf16.mxu0 0
        %1318 = vmatpush1.bf16.msra.mxu0 0
        %1319 = vmatprep.subr.bf16.mxu0 0
        %1320 = vmatpush1.bf16.msra.mxu0 0
        %1321 = vmatprep.subr.bf16.mxu0 0
        %1322 = vmatpush1.bf16.msra.mxu0 0
        %1323 = vmatprep.subr.bf16.mxu0 0
        %1324 = vmatpush1.bf16.msra.mxu0 0
        %1325 = vmatprep.subr.bf16.mxu0 0
        %1326 = vmatpush1.bf16.msra.mxu0 0
        %1327 = vmatprep.subr.bf16.mxu0 0
        %1328 = vmatpush1.bf16.msra.mxu0 0
        %1329 = vmatprep.mubr.bf16.mxu0 0
        %1330 = vmatmul.mubr.bf16.gmra.mrb[0].mxu0 %v1130
        %v1331 = vpop.f32.mrb[0].mxu0
        %v1332 = vadd.f32 0.0, %v1331
        %v1333 = vpop.f32.mrb[0].mxu0
        %v1334 = vpop.f32.mrb[0].mxu0
        %v1335 = vpop.f32.mrb[0].mxu0
        %1336 = vdwg.mxu0
        %v1337 = vpack.c.bf16 %v1332, %v1332
        %s1338 = scalar_lea.vmem [#allocation2], 8
        %v1339 = vld [vmem:[%s1338] sm:$0xff]
        %v1341 = vsel %vm1174, %v1337, 0
        %v1344 = vsel %vm1174, %v1339, 0
        %1346 = vmatprep.subr.bf16.mxu0 0
        %1347 = vmatpush1.bf16.xpose.msra.mxu0 %v1344
        %1348 = vmatprep.subr.bf16.mxu0 0
        %1349 = vmatpush1.bf16.xpose.msra.mxu0 0
        %1350 = vmatprep.subr.bf16.mxu0 0
        %1351 = vmatpush1.bf16.xpose.msra.mxu0 0
        %1352 = vmatprep.subr.bf16.mxu0 0
        %1353 = vmatpush1.bf16.xpose.msra.mxu0 0
        %1354 = vmatprep.subr.bf16.mxu0 0
        %1355 = vmatpush1.bf16.xpose.msra.mxu0 0
        %1356 = vmatprep.subr.bf16.mxu0 0
        %1357 = vmatpush1.bf16.xpose.msra.mxu0 0
        %1358 = vmatprep.subr.bf16.mxu0 0
        %1359 = vmatpush1.bf16.xpose.msra.mxu0 0
        %1360 = vmatprep.subr.bf16.mxu0 0
        %1361 = vmatpush1.bf16.xpose.msra.mxu0 0
        %1362 = vmatprep.subr.bf16.mxu0 0
        %1363 = vmatpush1.bf16.xpose.msra.mxu0 0
        %1364 = vmatprep.subr.bf16.mxu0 0
        %1365 = vmatpush1.bf16.xpose.msra.mxu0 0
        %1366 = vmatprep.subr.bf16.mxu0 0
        %1367 = vmatpush1.bf16.xpose.msra.mxu0 0
        %1368 = vmatprep.subr.bf16.mxu0 0
        %1369 = vmatpush1.bf16.xpose.msra.mxu0 0
        %1370 = vmatprep.subr.bf16.mxu0 0
        %1371 = vmatpush1.bf16.xpose.msra.mxu0 0
        %1372 = vmatprep.subr.bf16.mxu0 0
        %1373 = vmatpush1.bf16.xpose.msra.mxu0 0
        %1374 = vmatprep.subr.bf16.mxu0 0
        %1375 = vmatpush1.bf16.xpose.msra.mxu0 0
        %1376 = vmatprep.subr.bf16.mxu0 0
        %1377 = vmatpush1.bf16.xpose.msra.mxu0 0
        %1378 = vmatprep.mubr.bf16.mxu0 0
        %1379 = vmatmul.mubr.bf16.gmra.mrb[0].mxu0 %v1341
        %v1380 = vpop.f32.mrb[0].mxu0
        %v1381 = vadd.f32 0.0, %v1380
        %v1382 = vpop.f32.mrb[0].mxu0
        %v1383 = vpop.f32.mrb[0].mxu0
        %v1384 = vpop.f32.mrb[0].mxu0
        %1385 = vdwg.mxu0
        %v1386 = vsel %vm1221, %v1381, -inf
        %1387 = vmax.xlane.f32.xlu0 %v1386
        %v1388 = vpop.xlane.xlu0 %1387
        %v1389 = vsub.f32 %v1381, %v1388
        %v1390 = vmul.f32 %v1389, 1.442695
        %v1391 = vpow.pop %v1390
        %v1392 = vsel %vm1221, %v1391, 0.0
        %1393 = vadd.xlane.f32.xlu0 %v1392
        %v1394 = vpop.xlane.xlu0 %1393
        %v1395 = vrcp.pop %v1394
        %v1396 = vmul.f32 %v1391, %v1395
        %v1397 = vpack.c.bf16 %v1396, %v1396
        %s1398 = scalar_lea.vmem [#allocation3], 8
        %v1399 = vld [vmem:[%s1398] sm:$0xff]
        %v1401 = vsel %vm1221, %v1397, 0
        %1403 = vmatprep.subr.bf16.mxu0 0
        %1404 = vmatpush1.bf16.msra.mxu0 %v1399
        %1405 = vmatprep.subr.bf16.mxu0 0
        %1406 = vmatpush1.bf16.msra.mxu0 0
        %1407 = vmatprep.subr.bf16.mxu0 0
        %1408 = vmatpush1.bf16.msra.mxu0 0
        %1409 = vmatprep.subr.bf16.mxu0 0
        %1410 = vmatpush1.bf16.msra.mxu0 0
        %1411 = vmatprep.subr.bf16.mxu0 0
        %1412 = vmatpush1.bf16.msra.mxu0 0
        %1413 = vmatprep.subr.bf16.mxu0 0
        %1414 = vmatpush1.bf16.msra.mxu0 0
        %1415 = vmatprep.subr.bf16.mxu0 0
        %1416 = vmatpush1.bf16.msra.mxu0 0
        %1417 = vmatprep.subr.bf16.mxu0 0
        %1418 = vmatpush1.bf16.msra.mxu0 0
        %1419 = vmatprep.subr.bf16.mxu0 0
        %1420 = vmatpush1.bf16.msra.mxu0 0
        %1421 = vmatprep.subr.bf16.mxu0 0
        %1422 = vmatpush1.bf16.msra.mxu0 0
        %1423 = vmatprep.subr.bf16.mxu0 0
        %1424 = vmatpush1.bf16.msra.mxu0 0
        %1425 = vmatprep.subr.bf16.mxu0 0
        %1426 = vmatpush1.bf16.msra.mxu0 0
        %1427 = vmatprep.subr.bf16.mxu0 0
        %1428 = vmatpush1.bf16.msra.mxu0 0
        %1429 = vmatprep.subr.bf16.mxu0 0
        %1430 = vmatpush1.bf16.msra.mxu0 0
        %1431 = vmatprep.subr.bf16.mxu0 0
        %1432 = vmatpush1.bf16.msra.mxu0 0
        %1433 = vmatprep.subr.bf16.mxu0 0
        %1434 = vmatpush1.bf16.msra.mxu0 0
        %1435 = vmatprep.mubr.bf16.mxu0 0
        %1436 = vmatmul.mubr.bf16.gmra.mrb[0].mxu0 %v1401
        %v1437 = vpop.f32.mrb[0].mxu0
        %v1438 = vadd.f32 0.0, %v1437
        %v1439 = vpop.f32.mrb[0].mxu0
        %v1440 = vpop.f32.mrb[0].mxu0
        %v1441 = vpop.f32.mrb[0].mxu0
        %1442 = vdwg.mxu0
        %v1443 = vpack.c.bf16 %v1438, %v1438
        %s1444 = scalar_lea.vmem %s7, 4
        %v1445 = vld [vmem:[%s1444] sm:$0xf]
        %v1447 = vsel %vm1174, %v1443, 0
        %vm1449 = vcmask 1043456
        %v1451 = vsel %vm1449, %v1445, 0
        %1453 = vmatprep.subr.bf16.mxu0 0
        %1454 = vmatpush1.bf16.msra.mxu0 %v1451
        %1455 = vmatprep.subr.bf16.mxu0 0
        %1456 = vmatpush1.bf16.msra.mxu0 0
        %1457 = vmatprep.subr.bf16.mxu0 0
        %1458 = vmatpush1.bf16.msra.mxu0 0
        %1459 = vmatprep.subr.bf16.mxu0 0
        %1460 = vmatpush1.bf16.msra.mxu0 0
        %1461 = vmatprep.subr.bf16.mxu0 0
        %1462 = vmatpush1.bf16.msra.mxu0 0
        %1463 = vmatprep.subr.bf16.mxu0 0
        %1464 = vmatpush1.bf16.msra.mxu0 0
        %1465 = vmatprep.subr.bf16.mxu0 0
        %1466 = vmatpush1.bf16.msra.mxu0 0
        %1467 = vmatprep.subr.bf16.mxu0 0
        %1468 = vmatpush1.bf16.msra.mxu0 0
        %1469 = vmatprep.subr.bf16.mxu0 0
        %1470 = vmatpush1.bf16.msra.mxu0 0
        %1471 = vmatprep.subr.bf16.mxu0 0
        %1472 = vmatpush1.bf16.msra.mxu0 0
        %1473 = vmatprep.subr.bf16.mxu0 0
        %1474 = vmatpush1.bf16.msra.mxu0 0
        %1475 = vmatprep.subr.bf16.mxu0 0
        %1476 = vmatpush1.bf16.msra.mxu0 0
        %1477 = vmatprep.subr.bf16.mxu0 0
        %1478 = vmatpush1.bf16.msra.mxu0 0
        %1479 = vmatprep.subr.bf16.mxu0 0
        %1480 = vmatpush1.bf16.msra.mxu0 0
        %1481 = vmatprep.subr.bf16.mxu0 0
        %1482 = vmatpush1.bf16.msra.mxu0 0
        %1483 = vmatprep.subr.bf16.mxu0 0
        %1484 = vmatpush1.bf16.msra.mxu0 0
        %1485 = vmatprep.mubr.bf16.mxu0 0
        %1486 = vmatmul.mubr.bf16.gmra.mrb[0].mxu0 %v1447
        %v1487 = vpop.f32.mrb[0].mxu0
        %v1488 = vadd.f32 0.0, %v1487
        %v1489 = vpop.f32.mrb[0].mxu0
        %v1490 = vpop.f32.mrb[0].mxu0
        %v1491 = vpop.f32.mrb[0].mxu0
        %1492 = vdwg.mxu0
        %v1494 = vsel %vm1174, %v1278, 0
        %v1497 = vsel %vm1449, %v1279, 0
        %1499 = vmatprep.subr.bf16.mxu0 0
        %1500 = vmatpush1.bf16.msra.mxu0 %v1497
        %1501 = vmatprep.subr.bf16.mxu0 0
        %1502 = vmatpush1.bf16.msra.mxu0 0
        %1503 = vmatprep.subr.bf16.mxu0 0
        %1504 = vmatpush1.bf16.msra.mxu0 0
        %1505 = vmatprep.subr.bf16.mxu0 0
        %1506 = vmatpush1.bf16.msra.mxu0 0
        %1507 = vmatprep.subr.bf16.mxu0 0
        %1508 = vmatpush1.bf16.msra.mxu0 0
        %1509 = vmatprep.subr.bf16.mxu0 0
        %1510 = vmatpush1.bf16.msra.mxu0 0
        %1511 = vmatprep.subr.bf16.mxu0 0
        %1512 = vmatpush1.bf16.msra.mxu0 0
        %1513 = vmatprep.subr.bf16.mxu0 0
        %1514 = vmatpush1.bf16.msra.mxu0 0
        %1515 = vmatprep.subr.bf16.mxu0 0
        %1516 = vmatpush1.bf16.msra.mxu0 0
        %1517 = vmatprep.subr.bf16.mxu0 0
        %1518 = vmatpush1.bf16.msra.mxu0 0
        %1519 = vmatprep.subr.bf16.mxu0 0
        %1520 = vmatpush1.bf16.msra.mxu0 0
        %1521 = vmatprep.subr.bf16.mxu0 0
        %1522 = vmatpush1.bf16.msra.mxu0 0
        %1523 = vmatprep.subr.bf16.mxu0 0
        %1524 = vmatpush1.bf16.msra.mxu0 0
        %1525 = vmatprep.subr.bf16.mxu0 0
        %1526 = vmatpush1.bf16.msra.mxu0 0
        %1527 = vmatprep.subr.bf16.mxu0 0
        %1528 = vmatpush1.bf16.msra.mxu0 0
        %1529 = vmatprep.subr.bf16.mxu0 0
        %1530 = vmatpush1.bf16.msra.mxu0 0
        %1531 = vmatprep.mubr.bf16.mxu0 0
        %1532 = vmatmul.mubr.bf16.gmra.mrb[0].mxu0 %v1494
        %v1533 = vpop.f32.mrb[0].mxu0
        %v1534 = vadd.f32 %v1488, %v1533
        %v1535 = vpop.f32.mrb[0].mxu0
        %v1536 = vpop.f32.mrb[0].mxu0
        %v1537 = vpop.f32.mrb[0].mxu0
        %1538 = vdwg.mxu0
        %s1539 = scalar_lea.vmem %s4, 32
        %v1540 = vld [vmem:[%s1539] sm:$0xf]
        %v1541 = vld [vmem:[%s1539 + $0x4] sm:$0xf]
        %v1542 = vld [vmem:[%s1539 + $0x8] sm:$0xf]
        %v1543 = vld [vmem:[%s1539 + $0xc] sm:$0xf]
        %v1548 = vunpack.c.l.b16 %v1540
        %v1549 = vunpack.c.l.b16 %v1541
        %v1550 = vunpack.c.l.b16 %v1542
        %v1551 = vunpack.c.l.b16 %v1543
        %v1552 = vpack.c.b16 %v1549, %v1548
        %v1553 = vpack.c.b16 %v1551, %v1550
        %1556 = vmatprep.subr.bf16.mxu0 0
        %1557 = vmatpush1.bf16.msra.mxu0 %v1552
        %1558 = vmatprep.subr.bf16.mxu0 0
        %1559 = vmatpush1.bf16.msra.mxu0 %v1553
        %1560 = vmatprep.subr.bf16.mxu0 0
        %1561 = vmatpush1.bf16.msra.mxu0 0
        %1562 = vmatprep.subr.bf16.mxu0 0
        %1563 = vmatpush1.bf16.msra.mxu0 0
        %1564 = vmatprep.subr.bf16.mxu0 0
        %1565 = vmatpush1.bf16.msra.mxu0 0
        %1566 = vmatprep.subr.bf16.mxu0 0
        %1567 = vmatpush1.bf16.msra.mxu0 0
        %1568 = vmatprep.subr.bf16.mxu0 0
        %1569 = vmatpush1.bf16.msra.mxu0 0
        %1570 = vmatprep.subr.bf16.mxu0 0
        %1571 = vmatpush1.bf16.msra.mxu0 0
        %1572 = vmatprep.subr.bf16.mxu0 0
        %1573 = vmatpush1.bf16.msra.mxu0 0
        %1574 = vmatprep.subr.bf16.mxu0 0
        %1575 = vmatpush1.bf16.msra.mxu0 0
        %1576 = vmatprep.subr.bf16.mxu0 0
        %1577 = vmatpush1.bf16.msra.mxu0 0
        %1578 = vmatprep.subr.bf16.mxu0 0
        %1579 = vmatpush1.bf16.msra.mxu0 0
        %1580 = vmatprep.subr.bf16.mxu0 0
        %1581 = vmatpush1.bf16.msra.mxu0 0
        %1582 = vmatprep.subr.bf16.mxu0 0
        %1583 = vmatpush1.bf16.msra.mxu0 0
        %1584 = vmatprep.subr.bf16.mxu0 0
        %1585 = vmatpush1.bf16.msra.mxu0 0
        %1586 = vmatprep.subr.bf16.mxu0 0
        %1587 = vmatpush1.bf16.msra.mxu0 0
        %1588 = vmatprep.mubr.bf16.mxu0 0
        %1589 = vmatmul.mubr.bf16.gmra.mrb[0].mxu0 %v1130
        %v1590 = vpop.f32.mrb[0].mxu0
        %v1591 = vadd.f32 0.0, %v1590
        %v1592 = vpop.f32.mrb[0].mxu0
        %v1593 = vpop.f32.mrb[0].mxu0
        %v1594 = vpop.f32.mrb[0].mxu0
        %1595 = vdwg.mxu0
        %v1596 = vpack.c.bf16 %v1591, %v1591
        %s1597 = scalar_lea.vmem [#allocation2], 16
        %v1598 = vld [vmem:[%s1597] sm:$0xff]
        %v1600 = vsel %vm1174, %v1596, 0
        %v1603 = vsel %vm1174, %v1598, 0
        %1605 = vmatprep.subr.bf16.mxu0 0
        %1606 = vmatpush1.bf16.xpose.msra.mxu0 %v1603
        %1607 = vmatprep.subr.bf16.mxu0 0
        %1608 = vmatpush1.bf16.xpose.msra.mxu0 0
        %1609 = vmatprep.subr.bf16.mxu0 0
        %1610 = vmatpush1.bf16.xpose.msra.mxu0 0
        %1611 = vmatprep.subr.bf16.mxu0 0
        %1612 = vmatpush1.bf16.xpose.msra.mxu0 0
        %1613 = vmatprep.subr.bf16.mxu0 0
        %1614 = vmatpush1.bf16.xpose.msra.mxu0 0
        %1615 = vmatprep.subr.bf16.mxu0 0
        %1616 = vmatpush1.bf16.xpose.msra.mxu0 0
        %1617 = vmatprep.subr.bf16.mxu0 0
        %1618 = vmatpush1.bf16.xpose.msra.mxu0 0
        %1619 = vmatprep.subr.bf16.mxu0 0
        %1620 = vmatpush1.bf16.xpose.msra.mxu0 0
        %1621 = vmatprep.subr.bf16.mxu0 0
        %1622 = vmatpush1.bf16.xpose.msra.mxu0 0
        %1623 = vmatprep.subr.bf16.mxu0 0
        %1624 = vmatpush1.bf16.xpose.msra.mxu0 0
        %1625 = vmatprep.subr.bf16.mxu0 0
        %1626 = vmatpush1.bf16.xpose.msra.mxu0 0
        %1627 = vmatprep.subr.bf16.mxu0 0
        %1628 = vmatpush1.bf16.xpose.msra.mxu0 0
        %1629 = vmatprep.subr.bf16.mxu0 0
        %1630 = vmatpush1.bf16.xpose.msra.mxu0 0
        %1631 = vmatprep.subr.bf16.mxu0 0
        %1632 = vmatpush1.bf16.xpose.msra.mxu0 0
        %1633 = vmatprep.subr.bf16.mxu0 0
        %1634 = vmatpush1.bf16.xpose.msra.mxu0 0
        %1635 = vmatprep.subr.bf16.mxu0 0
        %1636 = vmatpush1.bf16.xpose.msra.mxu0 0
        %1637 = vmatprep.mubr.bf16.mxu0 0
        %1638 = vmatmul.mubr.bf16.gmra.mrb[0].mxu0 %v1600
        %v1639 = vpop.f32.mrb[0].mxu0
        %v1640 = vadd.f32 0.0, %v1639
        %v1641 = vpop.f32.mrb[0].mxu0
        %v1642 = vpop.f32.mrb[0].mxu0
        %v1643 = vpop.f32.mrb[0].mxu0
        %1644 = vdwg.mxu0
        %v1645 = vsel %vm1221, %v1640, -inf
        %1646 = vmax.xlane.f32.xlu0 %v1645
        %v1647 = vpop.xlane.xlu0 %1646
        %v1648 = vsub.f32 %v1640, %v1647
        %v1649 = vmul.f32 %v1648, 1.442695
        %v1650 = vpow.pop %v1649
        %v1651 = vsel %vm1221, %v1650, 0.0
        %1652 = vadd.xlane.f32.xlu0 %v1651
        %v1653 = vpop.xlane.xlu0 %1652
        %v1654 = vrcp.pop %v1653
        %v1655 = vmul.f32 %v1650, %v1654
        %v1656 = vpack.c.bf16 %v1655, %v1655
        %s1657 = scalar_lea.vmem [#allocation3], 16
        %v1658 = vld [vmem:[%s1657] sm:$0xff]
        %v1660 = vsel %vm1221, %v1656, 0
        %1662 = vmatprep.subr.bf16.mxu0 0
        %1663 = vmatpush1.bf16.msra.mxu0 %v1658
        %1664 = vmatprep.subr.bf16.mxu0 0
        %1665 = vmatpush1.bf16.msra.mxu0 0
        %1666 = vmatprep.subr.bf16.mxu0 0
        %1667 = vmatpush1.bf16.msra.mxu0 0
        %1668 = vmatprep.subr.bf16.mxu0 0
        %1669 = vmatpush1.bf16.msra.mxu0 0
        %1670 = vmatprep.subr.bf16.mxu0 0
        %1671 = vmatpush1.bf16.msra.mxu0 0
        %1672 = vmatprep.subr.bf16.mxu0 0
        %1673 = vmatpush1.bf16.msra.mxu0 0
        %1674 = vmatprep.subr.bf16.mxu0 0
        %1675 = vmatpush1.bf16.msra.mxu0 0
        %1676 = vmatprep.subr.bf16.mxu0 0
        %1677 = vmatpush1.bf16.msra.mxu0 0
        %1678 = vmatprep.subr.bf16.mxu0 0
        %1679 = vmatpush1.bf16.msra.mxu0 0
        %1680 = vmatprep.subr.bf16.mxu0 0
        %1681 = vmatpush1.bf16.msra.mxu0 0
        %1682 = vmatprep.subr.bf16.mxu0 0
        %1683 = vmatpush1.bf16.msra.mxu0 0
        %1684 = vmatprep.subr.bf16.mxu0 0
        %1685 = vmatpush1.bf16.msra.mxu0 0
        %1686 = vmatprep.subr.bf16.mxu0 0
        %1687 = vmatpush1.bf16.msra.mxu0 0
        %1688 = vmatprep.subr.bf16.mxu0 0
        %1689 = vmatpush1.bf16.msra.mxu0 0
        %1690 = vmatprep.subr.bf16.mxu0 0
        %1691 = vmatpush1.bf16.msra.mxu0 0
        %1692 = vmatprep.subr.bf16.mxu0 0
        %1693 = vmatpush1.bf16.msra.mxu0 0
        %1694 = vmatprep.mubr.bf16.mxu0 0
        %1695 = vmatmul.mubr.bf16.gmra.mrb[0].mxu0 %v1660
        %v1696 = vpop.f32.mrb[0].mxu0
        %v1697 = vadd.f32 0.0, %v1696
        %v1698 = vpop.f32.mrb[0].mxu0
        %v1699 = vpop.f32.mrb[0].mxu0
        %v1700 = vpop.f32.mrb[0].mxu0
        %1701 = vdwg.mxu0
        %v1702 = vpack.c.bf16 %v1697, %v1697
        %s1703 = scalar_lea.vmem %s7, 8
        %v1704 = vld [vmem:[%s1703] sm:$0xf]
        %v1706 = vsel %vm1174, %v1702, 0
        %v1709 = vsel %vm1449, %v1704, 0
        %1711 = vmatprep.subr.bf16.mxu0 0
        %1712 = vmatpush1.bf16.msra.mxu0 %v1709
        %1713 = vmatprep.subr.bf16.mxu0 0
        %1714 = vmatpush1.bf16.msra.mxu0 0
        %1715 = vmatprep.subr.bf16.mxu0 0
        %1716 = vmatpush1.bf16.msra.mxu0 0
        %1717 = vmatprep.subr.bf16.mxu0 0
        %1718 = vmatpush1.bf16.msra.mxu0 0
        %1719 = vmatprep.subr.bf16.mxu0 0
        %1720 = vmatpush1.bf16.msra.mxu0 0
        %1721 = vmatprep.subr.bf16.mxu0 0
        %1722 = vmatpush1.bf16.msra.mxu0 0
        %1723 = vmatprep.subr.bf16.mxu0 0
        %1724 = vmatpush1.bf16.msra.mxu0 0
        %1725 = vmatprep.subr.bf16.mxu0 0
        %1726 = vmatpush1.bf16.msra.mxu0 0
        %1727 = vmatprep.subr.bf16.mxu0 0
        %1728 = vmatpush1.bf16.msra.mxu0 0
        %1729 = vmatprep.subr.bf16.mxu0 0
        %1730 = vmatpush1.bf16.msra.mxu0 0
        %1731 = vmatprep.subr.bf16.mxu0 0
        %1732 = vmatpush1.bf16.msra.mxu0 0
        %1733 = vmatprep.subr.bf16.mxu0 0
        %1734 = vmatpush1.bf16.msra.mxu0 0
        %1735 = vmatprep.subr.bf16.mxu0 0
        %1736 = vmatpush1.bf16.msra.mxu0 0
        %1737 = vmatprep.subr.bf16.mxu0 0
        %1738 = vmatpush1.bf16.msra.mxu0 0
        %1739 = vmatprep.subr.bf16.mxu0 0
        %1740 = vmatpush1.bf16.msra.mxu0 0
        %1741 = vmatprep.subr.bf16.mxu0 0
        %1742 = vmatpush1.bf16.msra.mxu0 0
        %1743 = vmatprep.mubr.bf16.mxu0 0
        %1744 = vmatmul.mubr.bf16.gmra.mrb[0].mxu0 %v1706
        %v1745 = vpop.f32.mrb[0].mxu0
        %v1746 = vadd.f32 0.0, %v1745
        %v1747 = vpop.f32.mrb[0].mxu0
        %v1748 = vpop.f32.mrb[0].mxu0
        %v1749 = vpop.f32.mrb[0].mxu0
        %1750 = vdwg.mxu0
        %v1751 = vadd.f32 %v1534, %v1746
        %s1752 = scalar_lea.vmem %s4, 48
        %v1753 = vld [vmem:[%s1752] sm:$0xf]
        %v1754 = vld [vmem:[%s1752 + $0x4] sm:$0xf]
        %v1755 = vld [vmem:[%s1752 + $0x8] sm:$0xf]
        %v1756 = vld [vmem:[%s1752 + $0xc] sm:$0xf]
        %v1761 = vunpack.c.l.b16 %v1753
        %v1762 = vunpack.c.l.b16 %v1754
        %v1763 = vunpack.c.l.b16 %v1755
        %v1764 = vunpack.c.l.b16 %v1756
        %v1765 = vpack.c.b16 %v1762, %v1761
        %v1766 = vpack.c.b16 %v1764, %v1763
        %1769 = vmatprep.subr.bf16.mxu0 0
        %1770 = vmatpush1.bf16.msra.mxu0 %v1765
        %1771 = vmatprep.subr.bf16.mxu0 0
        %1772 = vmatpush1.bf16.msra.mxu0 %v1766
        %1773 = vmatprep.subr.bf16.mxu0 0
        %1774 = vmatpush1.bf16.msra.mxu0 0
        %1775 = vmatprep.subr.bf16.mxu0 0
        %1776 = vmatpush1.bf16.msra.mxu0 0
        %1777 = vmatprep.subr.bf16.mxu0 0
        %1778 = vmatpush1.bf16.msra.mxu0 0
        %1779 = vmatprep.subr.bf16.mxu0 0
        %1780 = vmatpush1.bf16.msra.mxu0 0
        %1781 = vmatprep.subr.bf16.mxu0 0
        %1782 = vmatpush1.bf16.msra.mxu0 0
        %1783 = vmatprep.subr.bf16.mxu0 0
        %1784 = vmatpush1.bf16.msra.mxu0 0
        %1785 = vmatprep.subr.bf16.mxu0 0
        %1786 = vmatpush1.bf16.msra.mxu0 0
        %1787 = vmatprep.subr.bf16.mxu0 0
        %1788 = vmatpush1.bf16.msra.mxu0 0
        %1789 = vmatprep.subr.bf16.mxu0 0
        %1790 = vmatpush1.bf16.msra.mxu0 0
        %1791 = vmatprep.subr.bf16.mxu0 0
        %1792 = vmatpush1.bf16.msra.mxu0 0
        %1793 = vmatprep.subr.bf16.mxu0 0
        %1794 = vmatpush1.bf16.msra.mxu0 0
        %1795 = vmatprep.subr.bf16.mxu0 0
        %1796 = vmatpush1.bf16.msra.mxu0 0
        %1797 = vmatprep.subr.bf16.mxu0 0
        %1798 = vmatpush1.bf16.msra.mxu0 0
        %1799 = vmatprep.subr.bf16.mxu0 0
        %1800 = vmatpush1.bf16.msra.mxu0 0
        %1801 = vmatprep.mubr.bf16.mxu0 0
        %1802 = vmatmul.mubr.bf16.gmra.mrb[0].mxu0 %v1130
        %v1803 = vpop.f32.mrb[0].mxu0
        %v1804 = vadd.f32 0.0, %v1803
        %v1805 = vpop.f32.mrb[0].mxu0
        %v1806 = vpop.f32.mrb[0].mxu0
        %v1807 = vpop.f32.mrb[0].mxu0
        %1808 = vdwg.mxu0
        %v1809 = vpack.c.bf16 %v1804, %v1804
        %s1810 = scalar_lea.vmem [#allocation2], 24
        %v1811 = vld [vmem:[%s1810] sm:$0xff]
        %v1813 = vsel %vm1174, %v1809, 0
        %v1816 = vsel %vm1174, %v1811, 0
        %1818 = vmatprep.subr.bf16.mxu0 0
        %1819 = vmatpush1.bf16.xpose.msra.mxu0 %v1816
        %1820 = vmatprep.subr.bf16.mxu0 0
        %1821 = vmatpush1.bf16.xpose.msra.mxu0 0
        %1822 = vmatprep.subr.bf16.mxu0 0
        %1823 = vmatpush1.bf16.xpose.msra.mxu0 0
        %1824 = vmatprep.subr.bf16.mxu0 0
        %1825 = vmatpush1.bf16.xpose.msra.mxu0 0
        %1826 = vmatprep.subr.bf16.mxu0 0
        %1827 = vmatpush1.bf16.xpose.msra.mxu0 0
        %1828 = vmatprep.subr.bf16.mxu0 0
        %1829 = vmatpush1.bf16.xpose.msra.mxu0 0
        %1830 = vmatprep.subr.bf16.mxu0 0
        %1831 = vmatpush1.bf16.xpose.msra.mxu0 0
        %1832 = vmatprep.subr.bf16.mxu0 0
        %1833 = vmatpush1.bf16.xpose.msra.mxu0 0
        %1834 = vmatprep.subr.bf16.mxu0 0
        %1835 = vmatpush1.bf16.xpose.msra.mxu0 0
        %1836 = vmatprep.subr.bf16.mxu0 0
        %1837 = vmatpush1.bf16.xpose.msra.mxu0 0
        %1838 = vmatprep.subr.bf16.mxu0 0
        %1839 = vmatpush1.bf16.xpose.msra.mxu0 0
        %1840 = vmatprep.subr.bf16.mxu0 0
        %1841 = vmatpush1.bf16.xpose.msra.mxu0 0
        %1842 = vmatprep.subr.bf16.mxu0 0
        %1843 = vmatpush1.bf16.xpose.msra.mxu0 0
        %1844 = vmatprep.subr.bf16.mxu0 0
        %1845 = vmatpush1.bf16.xpose.msra.mxu0 0
        %1846 = vmatprep.subr.bf16.mxu0 0
        %1847 = vmatpush1.bf16.xpose.msra.mxu0 0
        %1848 = vmatprep.subr.bf16.mxu0 0
        %1849 = vmatpush1.bf16.xpose.msra.mxu0 0
        %1850 = vmatprep.mubr.bf16.mxu0 0
        %1851 = vmatmul.mubr.bf16.gmra.mrb[0].mxu0 %v1813
        %v1852 = vpop.f32.mrb[0].mxu0
        %v1853 = vadd.f32 0.0, %v1852
        %v1854 = vpop.f32.mrb[0].mxu0
        %v1855 = vpop.f32.mrb[0].mxu0
        %v1856 = vpop.f32.mrb[0].mxu0
        %1857 = vdwg.mxu0
        %v1858 = vsel %vm1221, %v1853, -inf
        %1859 = vmax.xlane.f32.xlu0 %v1858
        %v1860 = vpop.xlane.xlu0 %1859
        %v1861 = vsub.f32 %v1853, %v1860
        %v1862 = vmul.f32 %v1861, 1.442695
        %v1863 = vpow.pop %v1862
        %v1864 = vsel %vm1221, %v1863, 0.0
        %1865 = vadd.xlane.f32.xlu0 %v1864
        %v1866 = vpop.xlane.xlu0 %1865
        %v1867 = vrcp.pop %v1866
        %v1868 = vmul.f32 %v1863, %v1867
        %v1869 = vpack.c.bf16 %v1868, %v1868
        %s1870 = scalar_lea.vmem [#allocation3], 24
        %v1871 = vld [vmem:[%s1870] sm:$0xff]
        %v1873 = vsel %vm1221, %v1869, 0
        %1875 = vmatprep.subr.bf16.mxu0 0
        %1876 = vmatpush1.bf16.msra.mxu0 %v1871
        %1877 = vmatprep.subr.bf16.mxu0 0
        %1878 = vmatpush1.bf16.msra.mxu0 0
        %1879 = vmatprep.subr.bf16.mxu0 0
        %1880 = vmatpush1.bf16.msra.mxu0 0
        %1881 = vmatprep.subr.bf16.mxu0 0
        %1882 = vmatpush1.bf16.msra.mxu0 0
        %1883 = vmatprep.subr.bf16.mxu0 0
        %1884 = vmatpush1.bf16.msra.mxu0 0
        %1885 = vmatprep.subr.bf16.mxu0 0
        %1886 = vmatpush1.bf16.msra.mxu0 0
        %1887 = vmatprep.subr.bf16.mxu0 0
        %1888 = vmatpush1.bf16.msra.mxu0 0
        %1889 = vmatprep.subr.bf16.mxu0 0
        %1890 = vmatpush1.bf16.msra.mxu0 0
        %1891 = vmatprep.subr.bf16.mxu0 0
        %1892 = vmatpush1.bf16.msra.mxu0 0
        %1893 = vmatprep.subr.bf16.mxu0 0
        %1894 = vmatpush1.bf16.msra.mxu0 0
        %1895 = vmatprep.subr.bf16.mxu0 0
        %1896 = vmatpush1.bf16.msra.mxu0 0
        %1897 = vmatprep.subr.bf16.mxu0 0
        %1898 = vmatpush1.bf16.msra.mxu0 0
        %1899 = vmatprep.subr.bf16.mxu0 0
        %1900 = vmatpush1.bf16.msra.mxu0 0
        %1901 = vmatprep.subr.bf16.mxu0 0
        %1902 = vmatpush1.bf16.msra.mxu0 0
        %1903 = vmatprep.subr.bf16.mxu0 0
        %1904 = vmatpush1.bf16.msra.mxu0 0
        %1905 = vmatprep.subr.bf16.mxu0 0
        %1906 = vmatpush1.bf16.msra.mxu0 0
        %1907 = vmatprep.mubr.bf16.mxu0 0
        %1908 = vmatmul.mubr.bf16.gmra.mrb[0].mxu0 %v1873
        %v1909 = vpop.f32.mrb[0].mxu0
        %v1910 = vadd.f32 0.0, %v1909
        %v1911 = vpop.f32.mrb[0].mxu0
        %v1912 = vpop.f32.mrb[0].mxu0
        %v1913 = vpop.f32.mrb[0].mxu0
        %1914 = vdwg.mxu0
        %v1915 = vpack.c.bf16 %v1910, %v1910
        %s1916 = scalar_lea.vmem %s7, 12
        %v1917 = vld [vmem:[%s1916] sm:$0xf]
        %v1919 = vsel %vm1174, %v1915, 0
        %v1922 = vsel %vm1449, %v1917, 0
        %1924 = vmatprep.subr.bf16.mxu0 0
        %1925 = vmatpush1.bf16.msra.mxu0 %v1922
        %1926 = vmatprep.subr.bf16.mxu0 0
        %1927 = vmatpush1.bf16.msra.mxu0 0
        %1928 = vmatprep.subr.bf16.mxu0 0
        %1929 = vmatpush1.bf16.msra.mxu0 0
        %1930 = vmatprep.subr.bf16.mxu0 0
        %1931 = vmatpush1.bf16.msra.mxu0 0
        %1932 = vmatprep.subr.bf16.mxu0 0
        %1933 = vmatpush1.bf16.msra.mxu0 0
        %1934 = vmatprep.subr.bf16.mxu0 0
        %1935 = vmatpush1.bf16.msra.mxu0 0
        %1936 = vmatprep.subr.bf16.mxu0 0
        %1937 = vmatpush1.bf16.msra.mxu0 0
        %1938 = vmatprep.subr.bf16.mxu0 0
        %1939 = vmatpush1.bf16.msra.mxu0 0
        %1940 = vmatprep.subr.bf16.mxu0 0
        %1941 = vmatpush1.bf16.msra.mxu0 0
        %1942 = vmatprep.subr.bf16.mxu0 0
        %1943 = vmatpush1.bf16.msra.mxu0 0
        %1944 = vmatprep.subr.bf16.mxu0 0
        %1945 = vmatpush1.bf16.msra.mxu0 0
        %1946 = vmatprep.subr.bf16.mxu0 0
        %1947 = vmatpush1.bf16.msra.mxu0 0
        %1948 = vmatprep.subr.bf16.mxu0 0
        %1949 = vmatpush1.bf16.msra.mxu0 0
        %1950 = vmatprep.subr.bf16.mxu0 0
        %1951 = vmatpush1.bf16.msra.mxu0 0
        %1952 = vmatprep.subr.bf16.mxu0 0
        %1953 = vmatpush1.bf16.msra.mxu0 0
        %1954 = vmatprep.subr.bf16.mxu0 0
        %1955 = vmatpush1.bf16.msra.mxu0 0
        %1956 = vmatprep.mubr.bf16.mxu0 0
        %1957 = vmatmul.mubr.bf16.gmra.mrb[0].mxu0 %v1919
        %v1958 = vpop.f32.mrb[0].mxu0
        %v1959 = vadd.f32 0.0, %v1958
        %v1960 = vpop.f32.mrb[0].mxu0
        %v1961 = vpop.f32.mrb[0].mxu0
        %v1962 = vpop.f32.mrb[0].mxu0
        %1963 = vdwg.mxu0
        %v1964 = vadd.f32 %v1751, %v1959
        %v1965 = vadd.f32 %v1080, %v1964
        %v1966 = vld [vmem:[%s8] sm:$0x1]
        %v1968 = vlaneseq
        %v1969 = vshrl.u32 %v1968, 7
        %v1970 = vsub.s32 0, %v1969
        %v1971 = vrot.slane %v1966, %v1970
        %v1973 = vadd.f32 %v1965, %v1971
        %v1974 = vld [vmem:[%s9] sm:$0x1]
        %v1975 = vld [vmem:[%s10] sm:$0x1]
        %v1976 = vsel %vm1083, %v1973, 0.0
        %1977 = vadd.xlane.f32.xlu0 %v1976
        %v1978 = vpop.xlane.xlu0 %1977
        %v1979 = vmul.f32 %v1978, %v1087
        %v1980 = vsub.f32 %v1973, %v1979
        %v1981 = vmul.f32 %v1980, %v1980
        %v1982 = vsel %vm1083, %v1981, 0.0
        %1983 = vadd.xlane.f32.xlu0 %v1982
        %v1984 = vpop.xlane.xlu0 %1983
        %v1985 = vmul.f32 %v1984, %v1087
        %v1986 = vadd.f32 %v1985, 1e-05
        %v1987 = vrsqrt.pop %v1986
        %v1988 = vmul.f32 %v1980, %v1987
        %v1990 = vlaneseq
        %v1991 = vshrl.u32 %v1990, 7
        %v1992 = vsub.s32 0, %v1991
        %v1993 = vrot.slane %v1974, %v1992
        %v1995 = vmul.f32 %v1988, %v1993
        %v1997 = vlaneseq
        %v1998 = vshrl.u32 %v1997, 7
        %v1999 = vsub.s32 0, %v1998
        %v2000 = vrot.slane %v1975, %v1999
        %v2002 = vadd.f32 %v1995, %v2000
        %v2003 = vpack.c.bf16 %v2002, %v2002
        %v2004 = vld [vmem:[%s11] sm:$0xf]
        %v2005 = vld [vmem:[%s11 + $0x4] sm:$0xf]
        %v2006 = vld [vmem:[%s11 + $0x8] sm:$0xf]
        %v2007 = vld [vmem:[%s11 + $0xc] sm:$0xf]
        %v2008 = vld [vmem:[%s12] sm:$0x1]
        %v2010 = vlaneseq
        %v2011 = vshrl.u32 %v2010, 7
        %v2012 = vsub.s32 0, %v2011
        %v2013 = vrot.slane %v2008, %v2012
        %v2019 = vunpack.c.l.b16 %v2004
        %v2020 = vunpack.c.l.b16 %v2005
        %v2021 = vunpack.c.l.b16 %v2006
        %v2022 = vunpack.c.l.b16 %v2007
        %v2023 = vpack.c.b16 %v2020, %v2019
        %v2024 = vpack.c.b16 %v2022, %v2021
        %v2028 = vsel %vm1083, %v2003, 0
        %2030 = vmatprep.subr.bf16.mxu0 0
        %2031 = vmatpush1.bf16.msra.mxu0 %v2023
        %2032 = vmatprep.subr.bf16.mxu0 0
        %2033 = vmatpush1.bf16.msra.mxu0 %v2024
        %2034 = vmatprep.subr.bf16.mxu0 0
        %2035 = vmatpush1.bf16.msra.mxu0 0
        %2036 = vmatprep.subr.bf16.mxu0 0
        %2037 = vmatpush1.bf16.msra.mxu0 0
        %2038 = vmatprep.subr.bf16.mxu0 0
        %2039 = vmatpush1.bf16.msra.mxu0 0
        %2040 = vmatprep.subr.bf16.mxu0 0
        %2041 = vmatpush1.bf16.msra.mxu0 0
        %2042 = vmatprep.subr.bf16.mxu0 0
        %2043 = vmatpush1.bf16.msra.mxu0 0
        %2044 = vmatprep.subr.bf16.mxu0 0
        %2045 = vmatpush1.bf16.msra.mxu0 0
        %2046 = vmatprep.subr.bf16.mxu0 0
        %2047 = vmatpush1.bf16.msra.mxu0 0
        %2048 = vmatprep.subr.bf16.mxu0 0
        %2049 = vmatpush1.bf16.msra.mxu0 0
        %2050 = vmatprep.subr.bf16.mxu0 0
        %2051 = vmatpush1.bf16.msra.mxu0 0
        %2052 = vmatprep.subr.bf16.mxu0 0
        %2053 = vmatpush1.bf16.msra.mxu0 0
        %2054 = vmatprep.subr.bf16.mxu0 0
        %2055 = vmatpush1.bf16.msra.mxu0 0
        %2056 = vmatprep.subr.bf16.mxu0 0
        %2057 = vmatpush1.bf16.msra.mxu0 0
        %2058 = vmatprep.subr.bf16.mxu0 0
        %2059 = vmatpush1.bf16.msra.mxu0 0
        %2060 = vmatprep.subr.bf16.mxu0 0
        %2061 = vmatpush1.bf16.msra.mxu0 0
        %2062 = vmatprep.mubr.bf16.mxu0 0
        %2063 = vmatmul.mubr.bf16.gmra.mrb[0].mxu0 %v2028
        %v2064 = vpop.f32.mrb[0].mxu0
        %v2065 = vadd.f32 %v2013, %v2064
        %v2066 = vpop.f32.mrb[0].mxu0
        %v2067 = vpop.f32.mrb[0].mxu0
        %v2068 = vpop.f32.mrb[0].mxu0
        %2069 = vdwg.mxu0
        %v2070 = vmax.f32 %v2065, 0.0
        %v2071 = vpack.c.bf16 %v2070, %v2070
        %v2072 = vld [vmem:[%s13] sm:$0xf]
        %v2073 = vld [vmem:[%s13 + $0x4] sm:$0xf]
        %v2074 = vld [vmem:[%s13 + $0x8] sm:$0xf]
        %v2075 = vld [vmem:[%s13 + $0xc] sm:$0xf]
        %v2076 = vld [vmem:[%s13 + $0x10] sm:$0xf]
        %v2077 = vld [vmem:[%s13 + $0x14] sm:$0xf]
        %v2078 = vld [vmem:[%s13 + $0x18] sm:$0xf]
        %v2079 = vld [vmem:[%s13 + $0x1c] sm:$0xf]
        %v2080 = vld [vmem:[%s13 + $0x20] sm:$0xf]
        %v2081 = vld [vmem:[%s13 + $0x24] sm:$0xf]
        %v2082 = vld [vmem:[%s13 + $0x28] sm:$0xf]
        %v2083 = vld [vmem:[%s13 + $0x2c] sm:$0xf]
        %v2084 = vld [vmem:[%s13 + $0x30] sm:$0xf]
        %v2085 = vld [vmem:[%s13 + $0x34] sm:$0xf]
        %v2086 = vld [vmem:[%s13 + $0x38] sm:$0xf]
        %v2087 = vld [vmem:[%s13 + $0x3c] sm:$0xf]
        %v2088 = vld [vmem:[%s14] sm:$0x1]
        %v2090 = vlaneseq
        %v2091 = vshrl.u32 %v2090, 7
        %v2092 = vsub.s32 0, %v2091
        %v2093 = vrot.slane %v2088, %v2092
        %v2111 = vunpack.c.l.b16 %v2072
        %v2112 = vunpack.c.l.b16 %v2073
        %v2113 = vunpack.c.l.b16 %v2074
        %v2114 = vunpack.c.l.b16 %v2075
        %v2115 = vunpack.c.l.b16 %v2076
        %v2116 = vunpack.c.l.b16 %v2077
        %v2117 = vunpack.c.l.b16 %v2078
        %v2118 = vunpack.c.l.b16 %v2079
        %v2119 = vunpack.c.l.b16 %v2080
        %v2120 = vunpack.c.l.b16 %v2081
        %v2121 = vunpack.c.l.b16 %v2082
        %v2122 = vunpack.c.l.b16 %v2083
        %v2123 = vunpack.c.l.b16 %v2084
        %v2124 = vunpack.c.l.b16 %v2085
        %v2125 = vunpack.c.l.b16 %v2086
        %v2126 = vunpack.c.l.b16 %v2087
        %v2127 = vpack.c.b16 %v2112, %v2111
        %v2128 = vpack.c.b16 %v2114, %v2113
        %v2129 = vpack.c.b16 %v2116, %v2115
        %v2130 = vpack.c.b16 %v2118, %v2117
        %v2131 = vpack.c.b16 %v2120, %v2119
        %v2132 = vpack.c.b16 %v2122, %v2121
        %v2133 = vpack.c.b16 %v2124, %v2123
        %v2134 = vpack.c.b16 %v2126, %v2125
        %2143 = vmatprep.subr.bf16.mxu0 0
        %2144 = vmatpush1.bf16.msra.mxu0 %v2127
        %2145 = vmatprep.subr.bf16.mxu0 0
        %2146 = vmatpush1.bf16.msra.mxu0 %v2128
        %2147 = vmatprep.subr.bf16.mxu0 0
        %2148 = vmatpush1.bf16.msra.mxu0 %v2129
        %2149 = vmatprep.subr.bf16.mxu0 0
        %2150 = vmatpush1.bf16.msra.mxu0 %v2130
        %2151 = vmatprep.subr.bf16.mxu0 0
        %2152 = vmatpush1.bf16.msra.mxu0 %v2131
        %2153 = vmatprep.subr.bf16.mxu0 0
        %2154 = vmatpush1.bf16.msra.mxu0 %v2132
        %2155 = vmatprep.subr.bf16.mxu0 0
        %2156 = vmatpush1.bf16.msra.mxu0 %v2133
        %2157 = vmatprep.subr.bf16.mxu0 0
        %2158 = vmatpush1.bf16.msra.mxu0 %v2134
        %2159 = vmatprep.subr.bf16.mxu0 0
        %2160 = vmatpush1.bf16.msra.mxu0 0
        %2161 = vmatprep.subr.bf16.mxu0 0
        %2162 = vmatpush1.bf16.msra.mxu0 0
        %2163 = vmatprep.subr.bf16.mxu0 0
        %2164 = vmatpush1.bf16.msra.mxu0 0
        %2165 = vmatprep.subr.bf16.mxu0 0
        %2166 = vmatpush1.bf16.msra.mxu0 0
        %2167 = vmatprep.subr.bf16.mxu0 0
        %2168 = vmatpush1.bf16.msra.mxu0 0
        %2169 = vmatprep.subr.bf16.mxu0 0
        %2170 = vmatpush1.bf16.msra.mxu0 0
        %2171 = vmatprep.subr.bf16.mxu0 0
        %2172 = vmatpush1.bf16.msra.mxu0 0
        %2173 = vmatprep.subr.bf16.mxu0 0
        %2174 = vmatpush1.bf16.msra.mxu0 0
        %2175 = vmatprep.mubr.bf16.mxu0 0
        %2176 = vmatmul.mubr.bf16.gmra.mrb[0].mxu0 %v2071
        %v2177 = vpop.f32.mrb[0].mxu0
        %v2178 = vadd.f32 %v2093, %v2177
        %v2179 = vpop.f32.mrb[0].mxu0
        %v2180 = vpop.f32.mrb[0].mxu0
        %v2181 = vpop.f32.mrb[0].mxu0
        %2182 = vdwg.mxu0
        %v2183 = vadd.f32 %v1973, %v2178
        %2184 = vst.msk [vmem:[%s524] sm:$0xff] %vm1083, %v2183
        %s2185 = sand.u32 %s378, 1
        %s2186 = scalar_lea.sflag [#allocation5], %s2185
        %s2187 = sand.u32 %s378, 1
        %s2188 = smul.addr %s2187, 8
        %s2189 = scalar_lea.vmem [#allocation4], %s2188
        // Predicated region
        $region85: #{tpu_custom_call.1} parent=79 // pred_check
          %p2190 = pneg %p388
        $region86: #{tpu_custom_call.1} parent=79 // pred_check_branch
          %2192 = sbr.rel (%p2190) target = $region88
        $region87: #{tpu_custom_call.1} parent=79 // pred_region
          %s2194 = ssub.s32 128, 128
          %2195 = vsyncadd %s2186, %s2194
          %s2196 = smul.addr %s33, 2
          %s2197 = sadd.s32 %s34, %s2196
          %s2198 = smul.addr %s2197, 128
          %s2199 = scalar_lea.hbm %s15, %s2198
          %s2201 = sshll.u32 %s2189, 4
          %s2202 = int_to_ptr.vmem [resolvable:$true] %s2201
          %2204 = dma.vmem_to_hbm [thread:$0]  %s2202, 128, %s2199, %s2186
        $region88: #{tpu_custom_call.1} parent=79 // pred_fallthru
          _
      $region80: #{tpu_custom_call.1} parent=5 // pred_fallthru
        _
      %p2205 = scmp.le.s32.totalorder 2, %s24
      // Predicated region
      $region89: #{tpu_custom_call.1} parent=5 // pred_check
        %p2206 = pneg %p2205
      $region90: #{tpu_custom_call.1} parent=5 // pred_check_branch
        %2208 = sbr.rel (%p2206) target = $region92
      $region91: #{tpu_custom_call.1} parent=5 // pred_region
        %s2209 = ssub.s32 %s24, 2
        // Predicated region
        $region93: #{tpu_custom_call.1} parent=91 // pred_check
          %p2210 = pneg %p394
        $region94: #{tpu_custom_call.1} parent=91 // pred_check_branch
          %2212 = sbr.rel (%p2210) target = $region96
        $region95: #{tpu_custom_call.1} parent=91 // pred_region
          %s2213 = sand.u32 %s379, 1
          %s2214 = scalar_lea.sflag [#allocation5], %s2213
          %s2215 = sand.u32 %s379, 1
          %s2216 = smul.addr %s2215, 8
          %s2217 = scalar_lea.vmem [#allocation4], %s2216
          %2218 = dma.done %s2214, 128
        $region96: #{tpu_custom_call.1} parent=91 // pred_fallthru
          _
      $region92: #{tpu_custom_call.1} parent=5 // pred_fallthru
        _
    $region6: #{tpu_custom_call.1} parent=1 // loop_footer
      %s28 = sadd.s32 1, %s24
    $region7: #{tpu_custom_call.1} parent=1 // loop_footer_branch
      %23 = sbr.rel target = $region3
    $region8: #{tpu_custom_call.1} parent=1 // loop_exit
      _
    %2219 = vsyncpa [#allocation5], 1
    %s2220 = scalar_lea.sflag [#allocation5], 1
    %2221 = vsyncpa %s2220, 1

</llo_original>
